<compile_context>
chip_gen: v7x
topology: tpu7x:2x2x1
jax: 0.10.0
libtpu: 0.0.40
codegen_flags: <defaults>
</compile_context>

<pallas_src>
import functools

import numpy as np
import jax
import jax.numpy as jnp
from jax import lax
from jax.experimental import pallas as pl
from jax.experimental.pallas import tpu as pltpu

EPS = 1e-5


# --------------------------------- kernel ----------------------------------- #
def _residual_block_kernel(x_ref, wb1_ref, wb2_ref, csel_ref,
                           g1_ref, be1_ref, g2_ref, be2_ref, o_ref,
                           *, rows_per_image, inv_count):
    """Fused conv3x3 -> BN -> ReLU -> conv3x3 -> BN -> +x -> ReLU.

    x_ref    : (R, L) f32, R = N*H/P block rows, L = P*W*C lanes (p, w, c packed)
    wb*_ref  : (3, L, L) stacked [same-block, from-row-above, from-row-below]
               banded conv-weight matrices (W padding via band clip)
    csel_ref : (L, L) 0/1 selector: (v @ csel)[..., c] = sum over all lanes of ch c
    g*_ref, be*_ref : (1, L) BN gamma/beta pre-tiled over (p, w)
    rows_per_image  : H // P   (static) -> per-image H-padding masks
    inv_count       : 1 / (N*H*W) (static)
    """
    x2d = x_ref[...]                                     # (R, L) f32
    R = x2d.shape[0]

    # per-image position of each packed block row -> H zero-padding masks
    row = lax.broadcasted_iota(jnp.int32, x2d.shape, 0)
    if (rows_per_image & (rows_per_image - 1)) == 0:     # static python branch
        pos = row & (rows_per_image - 1)
    else:
        pos = row % rows_per_image
    has_above = pos != 0                                 # block row above is same image
    has_below = pos != rows_per_image - 1                # block row below is same image

    csel_bf = csel_ref[...].astype(jnp.bfloat16)         # 0/1 -> exact in bf16

    def split(a):                                        # f32 -> (hi, lo) bf16 pair
        hi = a.astype(jnp.bfloat16)
        lo = (a - hi.astype(jnp.float32)).astype(jnp.bfloat16)
        return hi, lo

    def mxu(a, b):
        return jnp.dot(a, b, preferred_element_type=jnp.float32)

    def dot_f32x3(a, b):                                 # ~f32 accuracy, 3 bf16 passes
        a_hi, a_lo = split(a)
        b_hi, b_lo = split(b)
        return mxu(a_hi, b_hi) + mxu(a_hi, b_lo) + mxu(a_lo, b_hi)

    def conv3x3(v, wb_ref):
        # taps between rows inside the same block row (ky = 0/1/2 as applicable)
        acc = dot_f32x3(v, wb_ref[0])
        # ky = 0 tap that crosses block rows: data from the block row above
        above = jnp.where(has_above, pltpu.roll(v, shift=1, axis=0), 0.0)
        acc = acc + dot_f32x3(above, wb_ref[1])
        # ky = 2 tap that crosses block rows: data from the block row below
        below = jnp.where(has_below, pltpu.roll(v, shift=R - 1, axis=0), 0.0)
        acc = acc + dot_f32x3(below, wb_ref[2])
        return acc

    def channel_mean(s):                                 # (1, L) sums -> per-channel mean
        s_hi, s_lo = split(s)                            # csel is exact; split sums only
        return (mxu(s_hi, csel_bf) + mxu(s_lo, csel_bf)) * inv_count

    def batchnorm(y, gamma, beta):
        # PyTorch training-mode BN: per-batch biased stats over (N, H, W), eps=1e-5
        mean = channel_mean(jnp.sum(y, axis=0, keepdims=True))
        ex2 = channel_mean(jnp.sum(y * y, axis=0, keepdims=True))
        var = jnp.maximum(ex2 - mean * mean, 0.0)
        return (y - mean) * lax.rsqrt(var + EPS) * gamma + beta

    y = conv3x3(x2d, wb1_ref)
    y = jnp.maximum(batchnorm(y, g1_ref[...], be1_ref[...]), 0.0)
    y = conv3x3(y, wb2_ref)
    y = batchnorm(y, g2_ref[...], be2_ref[...])
    o_ref[...] = jnp.maximum(y + x2d, 0.0)               # residual + ReLU


# --------------------- host-side weight/constant builders -------------------- #
def _structural_constants(W, C, P):
    """Shape-only constants (numpy at trace time, jit-safe)."""
    csel = np.kron(np.ones((P * W, P * W), np.float32),
                   np.eye(C, dtype=np.float32))          # (P*W*C, P*W*C)
    kx = np.arange(3)[:, None, None]
    wi = np.arange(W)[None, :, None]
    wo = np.arange(W)[None, None, :]
    placement = (wi == wo + kx - 1).astype(np.float32)   # (3, W, W): band structure
    return jnp.asarray(csel), jnp.asarray(placement)


def _banded_conv_weights(w_oihw, placement, W, C, P):
    """PyTorch (C, C, 3, 3) weight -> (3, L, L) [same, above, below] matrices.

    band[ky, wi*C + ci, wo*C + co] = w[co, ci, ky, wi - wo + 1] for |wi - wo| <= 1
    (band clipping == zero padding along W).  Built with jnp ops only (jit-safe).
    """
    WC = W * C
    L = P * WC
    w = w_oihw.astype(jnp.float32)
    band = jnp.einsum('kab,oihk->haibo', placement, w).reshape(3, WC, WC)

    def put(mat, p_in, p_out, blk):
        return mat.at[p_in * WC:(p_in + 1) * WC, p_out * WC:(p_out + 1) * WC].set(blk)

    w_same = jnp.zeros((L, L), jnp.float32)
    for p_in in range(P):
        for p_out in range(P):
            if abs(p_in - p_out) <= 1:
                w_same = put(w_same, p_in, p_out, band[p_in - p_out + 1])
    w_above = put(jnp.zeros((L, L), jnp.float32), P - 1, 0, band[0])  # ky=0, cross-block
    w_below = put(jnp.zeros((L, L), jnp.float32), 0, P - 1, band[2])  # ky=2, cross-block
    return jnp.stack([w_same, w_above, w_below])


# --------------------------------- wrapper ----------------------------------- #
def residual_block_forward(x_nchw, params):
    x_nchw = x_nchw.astype(jnp.float32)
    N, C, H, W = x_nchw.shape

    # pack P image rows per block row so the lane dim is a full 128 when possible
    WC = W * C
    P = 1
    if WC <= 128 and 128 % WC == 0 and H % (128 // WC) == 0:
        P = 128 // WC
    R, L = (N * H) // P, P * WC

    csel, placement = _structural_constants(W, C, P)
    wb1 = _banded_conv_weights(params["w1"], placement, W, C, P)
    wb2 = _banded_conv_weights(params["w2"], placement, W, C, P)
    # NOTE: conv biases b1/b2 are dropped on purpose -- a per-channel constant
    # added before training-mode BatchNorm is cancelled exactly by the mean
    # subtraction.  (Would be wrong for eval-mode/running-stats BN.)

    def tile_param(p):                       # (C,) -> (1, L); value depends on c only
        return jnp.tile(jnp.asarray(p, jnp.float32).reshape(1, C), (1, P * W))

    g1, be1 = tile_param(params["g1"]), tile_param(params["be1"])
    g2, be2 = tile_param(params["g2"]), tile_param(params["be2"])

    # layout glue (tiny vs. the conv math): NCHW -> NHWC -> (R, P*W*C).
    # TODO(synk): accept NHWC (or this packed layout) at the call site to drop
    # these two relayout passes from the hot path entirely.
    x2d = jnp.transpose(x_nchw, (0, 2, 3, 1)).reshape(R, L)

    vmem = pl.BlockSpec(memory_space=pltpu.MemorySpace.VMEM)
    kernel = functools.partial(_residual_block_kernel,
                               rows_per_image=H // P,
                               inv_count=1.0 / float(N * H * W))

    out2d = pl.pallas_call(
        kernel,
        out_shape=jax.ShapeDtypeStruct((R, L), jnp.float32),
        in_specs=[vmem] * 8,
        out_specs=vmem,
        # footprint (< 1 MiB) is far under the default scoped VMEM on all
        # generations, so no vmem_limit override is needed here.
    )(x2d, wb1, wb2, csel, g1, be1, g2, be2)

    return jnp.transpose(out2d.reshape(N, H, W, C), (0, 3, 1, 2))    # -> NCHW


# ----------------------------- pure-JAX reference ----------------------------- #
def _reference_forward(x, params):
    def conv(z, w, b):
        y = lax.conv_general_dilated(
            z, w, window_strides=(1, 1), padding=((1, 1), (1, 1)),
            dimension_numbers=("NCHW", "OIHW", "NCHW"),
            precision=lax.Precision.HIGHEST)
        return y + b[None, :, None, None]

    def bn(y, g, be):
        mean = jnp.mean(y, axis=(0, 2, 3), keepdims=True)
        var = jnp.mean((y - mean) ** 2, axis=(0, 2, 3), keepdims=True)
        return (y - mean) * lax.rsqrt(var + EPS) * g[None, :, None, None] \
            + be[None, :, None, None]

    out = jax.nn.relu(bn(conv(x, params["w1"], params["b1"]),
                         params["g1"], params["be1"]))
    out = bn(conv(out, params["w2"], params["b2"]), params["g2"], params["be2"])
    return jax.nn.relu(out + x)


# ----------------------------------- main ------------------------------------ #
if __name__ == "__main__":
    key = jax.random.PRNGKey(0)
    N, C, H, W = 2, 4, 16, 16

    ks = jax.random.split(key, 8)
    x = jax.random.normal(ks[0], (N, C, H, W), jnp.float32)
    params = {
        "w1": 0.2 * jax.random.normal(ks[1], (C, C, 3, 3), jnp.float32),
        "b1": 0.05 * jax.random.normal(ks[2], (C,), jnp.float32),
        "g1": 1.0 + 0.1 * jax.random.normal(ks[3], (C,), jnp.float32),
        "be1": 0.1 * jax.random.normal(ks[4], (C,), jnp.float32),
        "w2": 0.2 * jax.random.normal(ks[5], (C, C, 3, 3), jnp.float32),
        "b2": 0.05 * jax.random.normal(ks[6], (C,), jnp.float32),
        "g2": 1.0 + 0.1 * jax.random.normal(ks[7], (C,), jnp.float32),
        "be2": jnp.zeros((C,), jnp.float32),
    }

    fwd = jax.jit(residual_block_forward)        # host glue is now jit-safe
    out = jax.block_until_ready(fwd(x, params))
    ref = jax.block_until_ready(_reference_forward(x, params))

    assert out.shape == (N, C, H, W)
    err = float(jnp.max(jnp.abs(out - ref)))
    # conv matmuls run as bf16 hi/lo 3-pass (~f32 accuracy); 5e-4 leaves margin
    assert jnp.allclose(out, ref, rtol=5e-4, atol=5e-4), f"max abs err = {err}"
    print("KERNEL_OK")
</pallas_src>

<mosaic_0001>
module attributes {stable_mosaic.version = 11 : i64} {
  func.func @_residual_block_kernel(%arg0: memref<16x128xf32, #tpu.memory_space<vmem>>, %arg1: memref<3x128x128xf32, #tpu.memory_space<vmem>>, %arg2: memref<3x128x128xf32, #tpu.memory_space<vmem>>, %arg3: memref<128x128xf32, #tpu.memory_space<vmem>>, %arg4: memref<1x128xf32, #tpu.memory_space<vmem>>, %arg5: memref<1x128xf32, #tpu.memory_space<vmem>>, %arg6: memref<1x128xf32, #tpu.memory_space<vmem>>, %arg7: memref<1x128xf32, #tpu.memory_space<vmem>>, %arg8: memref<16x128xf32, #tpu.memory_space<vmem>>) attributes {dimension_semantics = [], scalar_prefetch = 0 : i64, scratch_operands = 0 : i64, tpu.core_type = #tpu.core_type<tc>} {
    %c0 = arith.constant 0 : index
    %c0_0 = arith.constant 0 : index
    %0 = vector.load %arg0[%c0, %c0_0] : memref<16x128xf32, #tpu.memory_space<vmem>>, vector<16x128xf32>
    %1 = tpu.iota {dimensions = array<i32: 0>} : vector<16x128xi32>
    %c7_i32 = arith.constant 7 : i32
    %2 = vector.broadcast %c7_i32 : i32 to vector<16x128xi32>
    %3 = arith.andi %1, %2 : vector<16x128xi32>
    %c0_i32 = arith.constant 0 : i32
    %4 = vector.broadcast %c0_i32 : i32 to vector<16x128xi32>
    %5 = arith.cmpi ne, %3, %4 : vector<16x128xi32>
    %c7_i32_1 = arith.constant 7 : i32
    %6 = vector.broadcast %c7_i32_1 : i32 to vector<16x128xi32>
    %7 = arith.cmpi ne, %3, %6 : vector<16x128xi32>
    %c0_2 = arith.constant 0 : index
    %c0_3 = arith.constant 0 : index
    %8 = vector.load %arg3[%c0_2, %c0_3] : memref<128x128xf32, #tpu.memory_space<vmem>>, vector<128x128xf32>
    %9 = arith.truncf %8 : vector<128x128xf32> to vector<128x128xbf16>
    %c0_4 = arith.constant 0 : index
    %c0_5 = arith.constant 0 : index
    %c0_6 = arith.constant 0 : index
    %10 = vector.load %arg1[%c0_4, %c0_5, %c0_6] : memref<3x128x128xf32, #tpu.memory_space<vmem>>, vector<1x128x128xf32>
    %11 = vector.shape_cast %10 : vector<1x128x128xf32> to vector<128x128xf32>
    %12 = arith.truncf %0 : vector<16x128xf32> to vector<16x128xbf16>
    %13 = arith.extf %12 : vector<16x128xbf16> to vector<16x128xf32>
    %14 = arith.subf %0, %13 : vector<16x128xf32>
    %15 = arith.truncf %14 : vector<16x128xf32> to vector<16x128xbf16>
    %16 = arith.truncf %11 : vector<128x128xf32> to vector<128x128xbf16>
    %17 = arith.extf %16 : vector<128x128xbf16> to vector<128x128xf32>
    %18 = arith.subf %11, %17 : vector<128x128xf32>
    %19 = arith.truncf %18 : vector<128x128xf32> to vector<128x128xbf16>
    %cst = arith.constant dense<0.000000e+00> : vector<16x128xf32>
    %20 = tpu.matmul %12, %16, %cst {dimension_numbers = #tpu.dot_dimension_numbers<[1], [0], [0], [1], [0, 0, 1, 1], [], []>} : vector<16x128xbf16>, vector<128x128xbf16>, vector<16x128xf32> -> vector<16x128xf32>
    %cst_7 = arith.constant dense<0.000000e+00> : vector<16x128xf32>
    %21 = tpu.matmul %12, %19, %cst_7 {dimension_numbers = #tpu.dot_dimension_numbers<[1], [0], [0], [1], [0, 0, 1, 1], [], []>} : vector<16x128xbf16>, vector<128x128xbf16>, vector<16x128xf32> -> vector<16x128xf32>
    %22 = arith.addf %20, %21 : vector<16x128xf32>
    %cst_8 = arith.constant dense<0.000000e+00> : vector<16x128xf32>
    %23 = tpu.matmul %15, %16, %cst_8 {dimension_numbers = #tpu.dot_dimension_numbers<[1], [0], [0], [1], [0, 0, 1, 1], [], []>} : vector<16x128xbf16>, vector<128x128xbf16>, vector<16x128xf32> -> vector<16x128xf32>
    %24 = arith.addf %22, %23 : vector<16x128xf32>
    %c1_i32 = arith.constant 1 : i32
    %25 = tpu.dynamic_rotate %0 by %c1_i32 dim 0 : vector<16x128xf32>, i32 -> vector<16x128xf32>
    %cst_9 = arith.constant 0.000000e+00 : f32
    %26 = vector.broadcast %cst_9 : f32 to vector<16x128xf32>
    %27 = arith.select %5, %25, %26 : vector<16x128xi1>, vector<16x128xf32>
    %c1 = arith.constant 1 : index
    %c0_10 = arith.constant 0 : index
    %c0_11 = arith.constant 0 : index
    %28 = vector.load %arg1[%c1, %c0_10, %c0_11] : memref<3x128x128xf32, #tpu.memory_space<vmem>>, vector<1x128x128xf32>
    %29 = vector.shape_cast %28 : vector<1x128x128xf32> to vector<128x128xf32>
    %30 = arith.truncf %27 : vector<16x128xf32> to vector<16x128xbf16>
    %31 = arith.extf %30 : vector<16x128xbf16> to vector<16x128xf32>
    %32 = arith.subf %27, %31 : vector<16x128xf32>
    %33 = arith.truncf %32 : vector<16x128xf32> to vector<16x128xbf16>
    %34 = arith.truncf %29 : vector<128x128xf32> to vector<128x128xbf16>
    %35 = arith.extf %34 : vector<128x128xbf16> to vector<128x128xf32>
    %36 = arith.subf %29, %35 : vector<128x128xf32>
    %37 = arith.truncf %36 : vector<128x128xf32> to vector<128x128xbf16>
    %cst_12 = arith.constant dense<0.000000e+00> : vector<16x128xf32>
    %38 = tpu.matmul %30, %34, %cst_12 {dimension_numbers = #tpu.dot_dimension_numbers<[1], [0], [0], [1], [0, 0, 1, 1], [], []>} : vector<16x128xbf16>, vector<128x128xbf16>, vector<16x128xf32> -> vector<16x128xf32>
    %cst_13 = arith.constant dense<0.000000e+00> : vector<16x128xf32>
    %39 = tpu.matmul %30, %37, %cst_13 {dimension_numbers = #tpu.dot_dimension_numbers<[1], [0], [0], [1], [0, 0, 1, 1], [], []>} : vector<16x128xbf16>, vector<128x128xbf16>, vector<16x128xf32> -> vector<16x128xf32>
    %40 = arith.addf %38, %39 : vector<16x128xf32>
    %cst_14 = arith.constant dense<0.000000e+00> : vector<16x128xf32>
    %41 = tpu.matmul %33, %34, %cst_14 {dimension_numbers = #tpu.dot_dimension_numbers<[1], [0], [0], [1], [0, 0, 1, 1], [], []>} : vector<16x128xbf16>, vector<128x128xbf16>, vector<16x128xf32> -> vector<16x128xf32>
    %42 = arith.addf %40, %41 : vector<16x128xf32>
    %43 = arith.addf %24, %42 : vector<16x128xf32>
    %c15_i32 = arith.constant 15 : i32
    %44 = tpu.dynamic_rotate %0 by %c15_i32 dim 0 : vector<16x128xf32>, i32 -> vector<16x128xf32>
    %cst_15 = arith.constant 0.000000e+00 : f32
    %45 = vector.broadcast %cst_15 : f32 to vector<16x128xf32>
    %46 = arith.select %7, %44, %45 : vector<16x128xi1>, vector<16x128xf32>
    %c2 = arith.constant 2 : index
    %c0_16 = arith.constant 0 : index
    %c0_17 = arith.constant 0 : index
    %47 = vector.load %arg1[%c2, %c0_16, %c0_17] : memref<3x128x128xf32, #tpu.memory_space<vmem>>, vector<1x128x128xf32>
    %48 = vector.shape_cast %47 : vector<1x128x128xf32> to vector<128x128xf32>
    %49 = arith.truncf %46 : vector<16x128xf32> to vector<16x128xbf16>
    %50 = arith.extf %49 : vector<16x128xbf16> to vector<16x128xf32>
    %51 = arith.subf %46, %50 : vector<16x128xf32>
    %52 = arith.truncf %51 : vector<16x128xf32> to vector<16x128xbf16>
    %53 = arith.truncf %48 : vector<128x128xf32> to vector<128x128xbf16>
    %54 = arith.extf %53 : vector<128x128xbf16> to vector<128x128xf32>
    %55 = arith.subf %48, %54 : vector<128x128xf32>
    %56 = arith.truncf %55 : vector<128x128xf32> to vector<128x128xbf16>
    %cst_18 = arith.constant dense<0.000000e+00> : vector<16x128xf32>
    %57 = tpu.matmul %49, %53, %cst_18 {dimension_numbers = #tpu.dot_dimension_numbers<[1], [0], [0], [1], [0, 0, 1, 1], [], []>} : vector<16x128xbf16>, vector<128x128xbf16>, vector<16x128xf32> -> vector<16x128xf32>
    %cst_19 = arith.constant dense<0.000000e+00> : vector<16x128xf32>
    %58 = tpu.matmul %49, %56, %cst_19 {dimension_numbers = #tpu.dot_dimension_numbers<[1], [0], [0], [1], [0, 0, 1, 1], [], []>} : vector<16x128xbf16>, vector<128x128xbf16>, vector<16x128xf32> -> vector<16x128xf32>
    %59 = arith.addf %57, %58 : vector<16x128xf32>
    %cst_20 = arith.constant dense<0.000000e+00> : vector<16x128xf32>
    %60 = tpu.matmul %52, %53, %cst_20 {dimension_numbers = #tpu.dot_dimension_numbers<[1], [0], [0], [1], [0, 0, 1, 1], [], []>} : vector<16x128xbf16>, vector<128x128xbf16>, vector<16x128xf32> -> vector<16x128xf32>
    %61 = arith.addf %59, %60 : vector<16x128xf32>
    %62 = arith.addf %43, %61 : vector<16x128xf32>
    %c0_21 = arith.constant 0 : index
    %c0_22 = arith.constant 0 : index
    %63 = vector.load %arg4[%c0_21, %c0_22] : memref<1x128xf32, #tpu.memory_space<vmem>>, vector<1x128xf32>
    %c0_23 = arith.constant 0 : index
    %c0_24 = arith.constant 0 : index
    %64 = vector.load %arg5[%c0_23, %c0_24] : memref<1x128xf32, #tpu.memory_space<vmem>>, vector<1x128xf32>
    %cst_25 = arith.constant dense<0.000000e+00> : vector<128xf32>
    %65 = vector.multi_reduction <add>, %62, %cst_25 [0] : vector<16x128xf32> to vector<128xf32>
    %66 = vector.shape_cast %65 : vector<128xf32> to vector<1x128xf32>
    %67 = arith.truncf %66 : vector<1x128xf32> to vector<1x128xbf16>
    %68 = arith.extf %67 : vector<1x128xbf16> to vector<1x128xf32>
    %69 = arith.subf %66, %68 : vector<1x128xf32>
    %70 = arith.truncf %69 : vector<1x128xf32> to vector<1x128xbf16>
    %cst_26 = arith.constant dense<0.000000e+00> : vector<1x128xf32>
    %71 = tpu.matmul %67, %9, %cst_26 {dimension_numbers = #tpu.dot_dimension_numbers<[1], [0], [0], [1], [0, 0, 1, 1], [], []>} : vector<1x128xbf16>, vector<128x128xbf16>, vector<1x128xf32> -> vector<1x128xf32>
    %cst_27 = arith.constant dense<0.000000e+00> : vector<1x128xf32>
    %72 = tpu.matmul %70, %9, %cst_27 {dimension_numbers = #tpu.dot_dimension_numbers<[1], [0], [0], [1], [0, 0, 1, 1], [], []>} : vector<1x128xbf16>, vector<128x128xbf16>, vector<1x128xf32> -> vector<1x128xf32>
    %73 = arith.addf %71, %72 : vector<1x128xf32>
    %cst_28 = arith.constant 0.001953125 : f32
    %74 = vector.broadcast %cst_28 : f32 to vector<1x128xf32>
    %75 = arith.mulf %73, %74 : vector<1x128xf32>
    %76 = arith.mulf %62, %62 : vector<16x128xf32>
    %cst_29 = arith.constant dense<0.000000e+00> : vector<128xf32>
    %77 = vector.multi_reduction <add>, %76, %cst_29 [0] : vector<16x128xf32> to vector<128xf32>
    %78 = vector.shape_cast %77 : vector<128xf32> to vector<1x128xf32>
    %79 = arith.truncf %78 : vector<1x128xf32> to vector<1x128xbf16>
    %80 = arith.extf %79 : vector<1x128xbf16> to vector<1x128xf32>
    %81 = arith.subf %78, %80 : vector<1x128xf32>
    %82 = arith.truncf %81 : vector<1x128xf32> to vector<1x128xbf16>
    %cst_30 = arith.constant dense<0.000000e+00> : vector<1x128xf32>
    %83 = tpu.matmul %79, %9, %cst_30 {dimension_numbers = #tpu.dot_dimension_numbers<[1], [0], [0], [1], [0, 0, 1, 1], [], []>} : vector<1x128xbf16>, vector<128x128xbf16>, vector<1x128xf32> -> vector<1x128xf32>
    %cst_31 = arith.constant dense<0.000000e+00> : vector<1x128xf32>
    %84 = tpu.matmul %82, %9, %cst_31 {dimension_numbers = #tpu.dot_dimension_numbers<[1], [0], [0], [1], [0, 0, 1, 1], [], []>} : vector<1x128xbf16>, vector<128x128xbf16>, vector<1x128xf32> -> vector<1x128xf32>
    %85 = arith.addf %83, %84 : vector<1x128xf32>
    %cst_32 = arith.constant 0.001953125 : f32
    %86 = vector.broadcast %cst_32 : f32 to vector<1x128xf32>
    %87 = arith.mulf %85, %86 : vector<1x128xf32>
    %88 = arith.mulf %75, %75 : vector<1x128xf32>
    %89 = arith.subf %87, %88 : vector<1x128xf32>
    %cst_33 = arith.constant 0.000000e+00 : f32
    %90 = vector.broadcast %cst_33 : f32 to vector<1x128xf32>
    %91 = arith.maximumf %89, %90 : vector<1x128xf32>
    %92 = vector.broadcast %75 : vector<1x128xf32> to vector<16x128xf32>
    %93 = arith.subf %62, %92 : vector<16x128xf32>
    %cst_34 = arith.constant 9.99999974E-6 : f32
    %94 = vector.broadcast %cst_34 : f32 to vector<1x128xf32>
    %95 = arith.addf %91, %94 : vector<1x128xf32>
    %96 = math.rsqrt %95 : vector<1x128xf32>
    %97 = vector.broadcast %96 : vector<1x128xf32> to vector<16x128xf32>
    %98 = arith.mulf %93, %97 : vector<16x128xf32>
    %99 = vector.broadcast %63 : vector<1x128xf32> to vector<16x128xf32>
    %100 = arith.mulf %98, %99 : vector<16x128xf32>
    %101 = vector.broadcast %64 : vector<1x128xf32> to vector<16x128xf32>
    %102 = arith.addf %100, %101 : vector<16x128xf32>
    %cst_35 = arith.constant 0.000000e+00 : f32
    %103 = vector.broadcast %cst_35 : f32 to vector<16x128xf32>
    %104 = arith.maximumf %102, %103 : vector<16x128xf32>
    %c0_36 = arith.constant 0 : index
    %c0_37 = arith.constant 0 : index
    %c0_38 = arith.constant 0 : index
    %105 = vector.load %arg2[%c0_36, %c0_37, %c0_38] : memref<3x128x128xf32, #tpu.memory_space<vmem>>, vector<1x128x128xf32>
    %106 = vector.shape_cast %105 : vector<1x128x128xf32> to vector<128x128xf32>
    %107 = arith.truncf %104 : vector<16x128xf32> to vector<16x128xbf16>
    %108 = arith.extf %107 : vector<16x128xbf16> to vector<16x128xf32>
    %109 = arith.subf %104, %108 : vector<16x128xf32>
    %110 = arith.truncf %109 : vector<16x128xf32> to vector<16x128xbf16>
    %111 = arith.truncf %106 : vector<128x128xf32> to vector<128x128xbf16>
    %112 = arith.extf %111 : vector<128x128xbf16> to vector<128x128xf32>
    %113 = arith.subf %106, %112 : vector<128x128xf32>
    %114 = arith.truncf %113 : vector<128x128xf32> to vector<128x128xbf16>
    %cst_39 = arith.constant dense<0.000000e+00> : vector<16x128xf32>
    %115 = tpu.matmul %107, %111, %cst_39 {dimension_numbers = #tpu.dot_dimension_numbers<[1], [0], [0], [1], [0, 0, 1, 1], [], []>} : vector<16x128xbf16>, vector<128x128xbf16>, vector<16x128xf32> -> vector<16x128xf32>
    %cst_40 = arith.constant dense<0.000000e+00> : vector<16x128xf32>
    %116 = tpu.matmul %107, %114, %cst_40 {dimension_numbers = #tpu.dot_dimension_numbers<[1], [0], [0], [1], [0, 0, 1, 1], [], []>} : vector<16x128xbf16>, vector<128x128xbf16>, vector<16x128xf32> -> vector<16x128xf32>
    %117 = arith.addf %115, %116 : vector<16x128xf32>
    %cst_41 = arith.constant dense<0.000000e+00> : vector<16x128xf32>
    %118 = tpu.matmul %110, %111, %cst_41 {dimension_numbers = #tpu.dot_dimension_numbers<[1], [0], [0], [1], [0, 0, 1, 1], [], []>} : vector<16x128xbf16>, vector<128x128xbf16>, vector<16x128xf32> -> vector<16x128xf32>
    %119 = arith.addf %117, %118 : vector<16x128xf32>
    %c1_i32_42 = arith.constant 1 : i32
    %120 = tpu.dynamic_rotate %104 by %c1_i32_42 dim 0 : vector<16x128xf32>, i32 -> vector<16x128xf32>
    %cst_43 = arith.constant 0.000000e+00 : f32
    %121 = vector.broadcast %cst_43 : f32 to vector<16x128xf32>
    %122 = arith.select %5, %120, %121 : vector<16x128xi1>, vector<16x128xf32>
    %c1_44 = arith.constant 1 : index
    %c0_45 = arith.constant 0 : index
    %c0_46 = arith.constant 0 : index
    %123 = vector.load %arg2[%c1_44, %c0_45, %c0_46] : memref<3x128x128xf32, #tpu.memory_space<vmem>>, vector<1x128x128xf32>
    %124 = vector.shape_cast %123 : vector<1x128x128xf32> to vector<128x128xf32>
    %125 = arith.truncf %122 : vector<16x128xf32> to vector<16x128xbf16>
    %126 = arith.extf %125 : vector<16x128xbf16> to vector<16x128xf32>
    %127 = arith.subf %122, %126 : vector<16x128xf32>
    %128 = arith.truncf %127 : vector<16x128xf32> to vector<16x128xbf16>
    %129 = arith.truncf %124 : vector<128x128xf32> to vector<128x128xbf16>
    %130 = arith.extf %129 : vector<128x128xbf16> to vector<128x128xf32>
    %131 = arith.subf %124, %130 : vector<128x128xf32>
    %132 = arith.truncf %131 : vector<128x128xf32> to vector<128x128xbf16>
    %cst_47 = arith.constant dense<0.000000e+00> : vector<16x128xf32>
    %133 = tpu.matmul %125, %129, %cst_47 {dimension_numbers = #tpu.dot_dimension_numbers<[1], [0], [0], [1], [0, 0, 1, 1], [], []>} : vector<16x128xbf16>, vector<128x128xbf16>, vector<16x128xf32> -> vector<16x128xf32>
    %cst_48 = arith.constant dense<0.000000e+00> : vector<16x128xf32>
    %134 = tpu.matmul %125, %132, %cst_48 {dimension_numbers = #tpu.dot_dimension_numbers<[1], [0], [0], [1], [0, 0, 1, 1], [], []>} : vector<16x128xbf16>, vector<128x128xbf16>, vector<16x128xf32> -> vector<16x128xf32>
    %135 = arith.addf %133, %134 : vector<16x128xf32>
    %cst_49 = arith.constant dense<0.000000e+00> : vector<16x128xf32>
    %136 = tpu.matmul %128, %129, %cst_49 {dimension_numbers = #tpu.dot_dimension_numbers<[1], [0], [0], [1], [0, 0, 1, 1], [], []>} : vector<16x128xbf16>, vector<128x128xbf16>, vector<16x128xf32> -> vector<16x128xf32>
    %137 = arith.addf %135, %136 : vector<16x128xf32>
    %138 = arith.addf %119, %137 : vector<16x128xf32>
    %c15_i32_50 = arith.constant 15 : i32
    %139 = tpu.dynamic_rotate %104 by %c15_i32_50 dim 0 : vector<16x128xf32>, i32 -> vector<16x128xf32>
    %cst_51 = arith.constant 0.000000e+00 : f32
    %140 = vector.broadcast %cst_51 : f32 to vector<16x128xf32>
    %141 = arith.select %7, %139, %140 : vector<16x128xi1>, vector<16x128xf32>
    %c2_52 = arith.constant 2 : index
    %c0_53 = arith.constant 0 : index
    %c0_54 = arith.constant 0 : index
    %142 = vector.load %arg2[%c2_52, %c0_53, %c0_54] : memref<3x128x128xf32, #tpu.memory_space<vmem>>, vector<1x128x128xf32>
    %143 = vector.shape_cast %142 : vector<1x128x128xf32> to vector<128x128xf32>
    %144 = arith.truncf %141 : vector<16x128xf32> to vector<16x128xbf16>
    %145 = arith.extf %144 : vector<16x128xbf16> to vector<16x128xf32>
    %146 = arith.subf %141, %145 : vector<16x128xf32>
    %147 = arith.truncf %146 : vector<16x128xf32> to vector<16x128xbf16>
    %148 = arith.truncf %143 : vector<128x128xf32> to vector<128x128xbf16>
    %149 = arith.extf %148 : vector<128x128xbf16> to vector<128x128xf32>
    %150 = arith.subf %143, %149 : vector<128x128xf32>
    %151 = arith.truncf %150 : vector<128x128xf32> to vector<128x128xbf16>
    %cst_55 = arith.constant dense<0.000000e+00> : vector<16x128xf32>
    %152 = tpu.matmul %144, %148, %cst_55 {dimension_numbers = #tpu.dot_dimension_numbers<[1], [0], [0], [1], [0, 0, 1, 1], [], []>} : vector<16x128xbf16>, vector<128x128xbf16>, vector<16x128xf32> -> vector<16x128xf32>
    %cst_56 = arith.constant dense<0.000000e+00> : vector<16x128xf32>
    %153 = tpu.matmul %144, %151, %cst_56 {dimension_numbers = #tpu.dot_dimension_numbers<[1], [0], [0], [1], [0, 0, 1, 1], [], []>} : vector<16x128xbf16>, vector<128x128xbf16>, vector<16x128xf32> -> vector<16x128xf32>
    %154 = arith.addf %152, %153 : vector<16x128xf32>
    %cst_57 = arith.constant dense<0.000000e+00> : vector<16x128xf32>
    %155 = tpu.matmul %147, %148, %cst_57 {dimension_numbers = #tpu.dot_dimension_numbers<[1], [0], [0], [1], [0, 0, 1, 1], [], []>} : vector<16x128xbf16>, vector<128x128xbf16>, vector<16x128xf32> -> vector<16x128xf32>
    %156 = arith.addf %154, %155 : vector<16x128xf32>
    %157 = arith.addf %138, %156 : vector<16x128xf32>
    %c0_58 = arith.constant 0 : index
    %c0_59 = arith.constant 0 : index
    %158 = vector.load %arg6[%c0_58, %c0_59] : memref<1x128xf32, #tpu.memory_space<vmem>>, vector<1x128xf32>
    %c0_60 = arith.constant 0 : index
    %c0_61 = arith.constant 0 : index
    %159 = vector.load %arg7[%c0_60, %c0_61] : memref<1x128xf32, #tpu.memory_space<vmem>>, vector<1x128xf32>
    %cst_62 = arith.constant dense<0.000000e+00> : vector<128xf32>
    %160 = vector.multi_reduction <add>, %157, %cst_62 [0] : vector<16x128xf32> to vector<128xf32>
    %161 = vector.shape_cast %160 : vector<128xf32> to vector<1x128xf32>
    %162 = arith.truncf %161 : vector<1x128xf32> to vector<1x128xbf16>
    %163 = arith.extf %162 : vector<1x128xbf16> to vector<1x128xf32>
    %164 = arith.subf %161, %163 : vector<1x128xf32>
    %165 = arith.truncf %164 : vector<1x128xf32> to vector<1x128xbf16>
    %cst_63 = arith.constant dense<0.000000e+00> : vector<1x128xf32>
    %166 = tpu.matmul %162, %9, %cst_63 {dimension_numbers = #tpu.dot_dimension_numbers<[1], [0], [0], [1], [0, 0, 1, 1], [], []>} : vector<1x128xbf16>, vector<128x128xbf16>, vector<1x128xf32> -> vector<1x128xf32>
    %cst_64 = arith.constant dense<0.000000e+00> : vector<1x128xf32>
    %167 = tpu.matmul %165, %9, %cst_64 {dimension_numbers = #tpu.dot_dimension_numbers<[1], [0], [0], [1], [0, 0, 1, 1], [], []>} : vector<1x128xbf16>, vector<128x128xbf16>, vector<1x128xf32> -> vector<1x128xf32>
    %168 = arith.addf %166, %167 : vector<1x128xf32>
    %cst_65 = arith.constant 0.001953125 : f32
    %169 = vector.broadcast %cst_65 : f32 to vector<1x128xf32>
    %170 = arith.mulf %168, %169 : vector<1x128xf32>
    %171 = arith.mulf %157, %157 : vector<16x128xf32>
    %cst_66 = arith.constant dense<0.000000e+00> : vector<128xf32>
    %172 = vector.multi_reduction <add>, %171, %cst_66 [0] : vector<16x128xf32> to vector<128xf32>
    %173 = vector.shape_cast %172 : vector<128xf32> to vector<1x128xf32>
    %174 = arith.truncf %173 : vector<1x128xf32> to vector<1x128xbf16>
    %175 = arith.extf %174 : vector<1x128xbf16> to vector<1x128xf32>
    %176 = arith.subf %173, %175 : vector<1x128xf32>
    %177 = arith.truncf %176 : vector<1x128xf32> to vector<1x128xbf16>
    %cst_67 = arith.constant dense<0.000000e+00> : vector<1x128xf32>
    %178 = tpu.matmul %174, %9, %cst_67 {dimension_numbers = #tpu.dot_dimension_numbers<[1], [0], [0], [1], [0, 0, 1, 1], [], []>} : vector<1x128xbf16>, vector<128x128xbf16>, vector<1x128xf32> -> vector<1x128xf32>
    %cst_68 = arith.constant dense<0.000000e+00> : vector<1x128xf32>
    %179 = tpu.matmul %177, %9, %cst_68 {dimension_numbers = #tpu.dot_dimension_numbers<[1], [0], [0], [1], [0, 0, 1, 1], [], []>} : vector<1x128xbf16>, vector<128x128xbf16>, vector<1x128xf32> -> vector<1x128xf32>
    %180 = arith.addf %178, %179 : vector<1x128xf32>
    %cst_69 = arith.constant 0.001953125 : f32
    %181 = vector.broadcast %cst_69 : f32 to vector<1x128xf32>
    %182 = arith.mulf %180, %181 : vector<1x128xf32>
    %183 = arith.mulf %170, %170 : vector<1x128xf32>
    %184 = arith.subf %182, %183 : vector<1x128xf32>
    %cst_70 = arith.constant 0.000000e+00 : f32
    %185 = vector.broadcast %cst_70 : f32 to vector<1x128xf32>
    %186 = arith.maximumf %184, %185 : vector<1x128xf32>
    %187 = vector.broadcast %170 : vector<1x128xf32> to vector<16x128xf32>
    %188 = arith.subf %157, %187 : vector<16x128xf32>
    %cst_71 = arith.constant 9.99999974E-6 : f32
    %189 = vector.broadcast %cst_71 : f32 to vector<1x128xf32>
    %190 = arith.addf %186, %189 : vector<1x128xf32>
    %191 = math.rsqrt %190 : vector<1x128xf32>
    %192 = vector.broadcast %191 : vector<1x128xf32> to vector<16x128xf32>
    %193 = arith.mulf %188, %192 : vector<16x128xf32>
    %194 = vector.broadcast %158 : vector<1x128xf32> to vector<16x128xf32>
    %195 = arith.mulf %193, %194 : vector<16x128xf32>
    %196 = vector.broadcast %159 : vector<1x128xf32> to vector<16x128xf32>
    %197 = arith.addf %195, %196 : vector<16x128xf32>
    %198 = arith.addf %197, %0 : vector<16x128xf32>
    %cst_72 = arith.constant 0.000000e+00 : f32
    %199 = vector.broadcast %cst_72 : f32 to vector<16x128xf32>
    %200 = arith.maximumf %198, %199 : vector<16x128xf32>
    %c0_73 = arith.constant 0 : index
    %c0_74 = arith.constant 0 : index
    %201 = vector.load %arg8[%c0_73, %c0_74] : memref<16x128xf32, #tpu.memory_space<vmem>>, vector<16x128xf32>
    tpu.vector_store %arg8[%c0_73, %c0_74], %200 {strides = array<i32>} : memref<16x128xf32, #tpu.memory_space<vmem>>, vector<16x128xf32>,
    return
  }
}

</mosaic_0001>

<llo_original>
// kernel: residual_block_forward.1
$region0: #{residual_block_forward.1}
  #allocation0 [shape = 'u32[]', space=smem, size = 0x4, offset = 0x4, fixed_abs, tag = 'smem constant byte address 0x4 - core index']
  #allocation1 [shape = 'u32[144,128]{1,0:T(1,128)}', space=vmem, size = 0x12000, scoped, tag = 'internal scratch']
  %s0 = inlined_call_operand.vmem [shape: f32[16,128], index: 0, kind: input, shape index: {}]
  %s1 = inlined_call_operand.vmem [shape: f32[3,128,128], index: 1, kind: input, shape index: {}]
  %s2 = inlined_call_operand.vmem [shape: f32[3,128,128], index: 2, kind: input, shape index: {}]
  %s3 = inlined_call_operand.vmem [shape: f32[128,128], index: 3, kind: input, shape index: {}]
  %s4 = inlined_call_operand.vmem [shape: f32[1,128], index: 4, kind: input, shape index: {}]
  %s5 = inlined_call_operand.vmem [shape: f32[1,128], index: 5, kind: input, shape index: {}]
  %s6 = inlined_call_operand.vmem [shape: f32[1,128], index: 6, kind: input, shape index: {}]
  %s7 = inlined_call_operand.vmem [shape: f32[1,128], index: 7, kind: input, shape index: {}]
  %s8 = inlined_call_operand.vmem [shape: f32[16,128], index: 8, kind: output, shape index: {}]
  %s9 = sld [smem:[#allocation0]]
  $region42: #{residual_block_forward.1} parent=0
    _
  %s11 = ssub.s32 1, %s9
  %s12 = scalar_select 0, %s11, %s9
  // Predicated region
  $region2: #{residual_block_forward.1} parent=0 // pred_check
    _
  $region3: #{residual_block_forward.1} parent=0 // pred_check_branch
    %14 = sbr.rel (0) target = $region5
  $region4: #{residual_block_forward.1} parent=0 // pred_region
    _
  $region5: #{residual_block_forward.1} parent=0 // pred_fallthru
    _
  // Predicated region
  $region6: #{residual_block_forward.1} parent=0 // pred_check
    _
  $region7: #{residual_block_forward.1} parent=0 // pred_check_branch
    %16 = sbr.rel (0) target = $region9
  $region8: #{residual_block_forward.1} parent=0 // pred_region
    _
  $region9: #{residual_block_forward.1} parent=0 // pred_fallthru
    _
  // Predicated region
  $region10: #{residual_block_forward.1} parent=0 // pred_check
    _
  $region11: #{residual_block_forward.1} parent=0 // pred_check_branch
    %18 = sbr.rel (0) target = $region13
  $region12: #{residual_block_forward.1} parent=0 // pred_region
    _
  $region13: #{residual_block_forward.1} parent=0 // pred_fallthru
    _
  // Predicated region
  $region14: #{residual_block_forward.1} parent=0 // pred_check
    _
  $region15: #{residual_block_forward.1} parent=0 // pred_check_branch
    %20 = sbr.rel (0) target = $region17
  $region16: #{residual_block_forward.1} parent=0 // pred_region
    _
  $region17: #{residual_block_forward.1} parent=0 // pred_fallthru
    _
  // Predicated region
  $region18: #{residual_block_forward.1} parent=0 // pred_check
    _
  $region19: #{residual_block_forward.1} parent=0 // pred_check_branch
    %22 = sbr.rel (0) target = $region21
  $region20: #{residual_block_forward.1} parent=0 // pred_region
    _
  $region21: #{residual_block_forward.1} parent=0 // pred_fallthru
    _
  // Predicated region
  $region22: #{residual_block_forward.1} parent=0 // pred_check
    _
  $region23: #{residual_block_forward.1} parent=0 // pred_check_branch
    %24 = sbr.rel (0) target = $region25
  $region24: #{residual_block_forward.1} parent=0 // pred_region
    _
  $region25: #{residual_block_forward.1} parent=0 // pred_fallthru
    _
  // Predicated region
  $region26: #{residual_block_forward.1} parent=0 // pred_check
    _
  $region27: #{residual_block_forward.1} parent=0 // pred_check_branch
    %26 = sbr.rel (0) target = $region29
  $region28: #{residual_block_forward.1} parent=0 // pred_region
    _
  $region29: #{residual_block_forward.1} parent=0 // pred_fallthru
    _
  // Predicated region
  $region30: #{residual_block_forward.1} parent=0 // pred_check
    _
  $region31: #{residual_block_forward.1} parent=0 // pred_check_branch
    %28 = sbr.rel (0) target = $region33
  $region32: #{residual_block_forward.1} parent=0 // pred_region
    _
  $region33: #{residual_block_forward.1} parent=0 // pred_fallthru
    _
  %v30 = vld [vmem:[%s0] sm:$0xff]
  %v31 = vld [vmem:[%s0 + $0x8] sm:$0xff]
  %v32 = vlaneseq
  %v33 = vshrl.u32 %v32, 7
  %v34 = vadd.s32 %v33, 8
  %v35 = vand.u32 %v33, 7
  %v36 = vand.u32 %v34, 7
  %vm37 = vcmp.ne.s32.totalorder %v35, 0
  %vm38 = vcmp.ne.s32.totalorder %v36, 0
  %vm39 = vcmp.ne.s32.totalorder %v35, 7
  %vm40 = vcmp.ne.s32.totalorder %v36, 7
  %v41 = vld [vmem:[%s3] sm:$0xff]
  %v42 = vld [vmem:[%s3 + $0x8] sm:$0xff]
  %v43 = vld [vmem:[%s3 + $0x10] sm:$0xff]
  %v44 = vld [vmem:[%s3 + $0x18] sm:$0xff]
  %v45 = vld [vmem:[%s3 + $0x20] sm:$0xff]
  %v46 = vld [vmem:[%s3 + $0x28] sm:$0xff]
  %v47 = vld [vmem:[%s3 + $0x30] sm:$0xff]
  %v48 = vld [vmem:[%s3 + $0x38] sm:$0xff]
  %v49 = vld [vmem:[%s3 + $0x40] sm:$0xff]
  %v50 = vld [vmem:[%s3 + $0x48] sm:$0xff]
  %v51 = vld [vmem:[%s3 + $0x50] sm:$0xff]
  %v52 = vld [vmem:[%s3 + $0x58] sm:$0xff]
  %v53 = vld [vmem:[%s3 + $0x60] sm:$0xff]
  %v54 = vld [vmem:[%s3 + $0x68] sm:$0xff]
  %v55 = vld [vmem:[%s3 + $0x70] sm:$0xff]
  %v56 = vld [vmem:[%s3 + $0x78] sm:$0xff]
  %v57 = vpack.c.bf16 %v42, %v41
  %v58 = vpack.c.bf16 %v44, %v43
  %v59 = vpack.c.bf16 %v46, %v45
  %v60 = vpack.c.bf16 %v48, %v47
  %v61 = vpack.c.bf16 %v50, %v49
  %v62 = vpack.c.bf16 %v52, %v51
  %v63 = vpack.c.bf16 %v54, %v53
  %v64 = vpack.c.bf16 %v56, %v55
  %v65 = vld [vmem:[%s1] sm:$0xff]
  %v66 = vld [vmem:[%s1 + $0x8] sm:$0xff]
  %v67 = vld [vmem:[%s1 + $0x10] sm:$0xff]
  %v68 = vld [vmem:[%s1 + $0x18] sm:$0xff]
  %v69 = vld [vmem:[%s1 + $0x20] sm:$0xff]
  %v70 = vld [vmem:[%s1 + $0x28] sm:$0xff]
  %v71 = vld [vmem:[%s1 + $0x30] sm:$0xff]
  %v72 = vld [vmem:[%s1 + $0x38] sm:$0xff]
  %v73 = vld [vmem:[%s1 + $0x40] sm:$0xff]
  %v74 = vld [vmem:[%s1 + $0x48] sm:$0xff]
  %v75 = vld [vmem:[%s1 + $0x50] sm:$0xff]
  %v76 = vld [vmem:[%s1 + $0x58] sm:$0xff]
  %v77 = vld [vmem:[%s1 + $0x60] sm:$0xff]
  %v78 = vld [vmem:[%s1 + $0x68] sm:$0xff]
  %v79 = vld [vmem:[%s1 + $0x70] sm:$0xff]
  %v80 = vld [vmem:[%s1 + $0x78] sm:$0xff]
  %v81 = vpack.c.bf16 %v31, %v30
  %v82 = vunpack.c.l.bf16 %v81
  %v83 = vunpack.c.h.bf16 %v81
  %v84 = vsub.f32 %v30, %v82
  %v85 = vsub.f32 %v31, %v83
  %v86 = vpack.c.bf16 %v85, %v84
  %v87 = vpack.c.bf16 %v66, %v65
  %v88 = vpack.c.bf16 %v68, %v67
  %v89 = vpack.c.bf16 %v70, %v69
  %v90 = vpack.c.bf16 %v72, %v71
  %v91 = vpack.c.bf16 %v74, %v73
  %v92 = vpack.c.bf16 %v76, %v75
  %v93 = vpack.c.bf16 %v78, %v77
  %v94 = vpack.c.bf16 %v80, %v79
  %v95 = vunpack.c.l.bf16 %v87
  %v96 = vunpack.c.h.bf16 %v87
  %v97 = vunpack.c.l.bf16 %v88
  %v98 = vunpack.c.h.bf16 %v88
  %v99 = vunpack.c.l.bf16 %v89
  %v100 = vunpack.c.h.bf16 %v89
  %v101 = vunpack.c.l.bf16 %v90
  %v102 = vunpack.c.h.bf16 %v90
  %v103 = vunpack.c.l.bf16 %v91
  %v104 = vunpack.c.h.bf16 %v91
  %v105 = vunpack.c.l.bf16 %v92
  %v106 = vunpack.c.h.bf16 %v92
  %v107 = vunpack.c.l.bf16 %v93
  %v108 = vunpack.c.h.bf16 %v93
  %v109 = vunpack.c.l.bf16 %v94
  %v110 = vunpack.c.h.bf16 %v94
  %v111 = vsub.f32 %v65, %v95
  %v112 = vsub.f32 %v66, %v96
  %v113 = vsub.f32 %v67, %v97
  %v114 = vsub.f32 %v68, %v98
  %v115 = vsub.f32 %v69, %v99
  %v116 = vsub.f32 %v70, %v100
  %v117 = vsub.f32 %v71, %v101
  %v118 = vsub.f32 %v72, %v102
  %v119 = vsub.f32 %v73, %v103
  %v120 = vsub.f32 %v74, %v104
  %v121 = vsub.f32 %v75, %v105
  %v122 = vsub.f32 %v76, %v106
  %v123 = vsub.f32 %v77, %v107
  %v124 = vsub.f32 %v78, %v108
  %v125 = vsub.f32 %v79, %v109
  %v126 = vsub.f32 %v80, %v110
  %v127 = vpack.c.bf16 %v112, %v111
  %v128 = vpack.c.bf16 %v114, %v113
  %v129 = vpack.c.bf16 %v116, %v115
  %v130 = vpack.c.bf16 %v118, %v117
  %v131 = vpack.c.bf16 %v120, %v119
  %v132 = vpack.c.bf16 %v122, %v121
  %v133 = vpack.c.bf16 %v124, %v123
  %v134 = vpack.c.bf16 %v126, %v125
  %135 = vmatprep.subr.bf16.mxu0 0
  %136 = vmatpush1.bf16.msra.mxu0 %v127
  %137 = vmatprep.subr.bf16.mxu0 0
  %138 = vmatpush1.bf16.msra.mxu0 %v128
  %139 = vmatprep.subr.bf16.mxu0 0
  %140 = vmatpush1.bf16.msra.mxu0 %v129
  %141 = vmatprep.subr.bf16.mxu0 0
  %142 = vmatpush1.bf16.msra.mxu0 %v130
  %143 = vmatprep.subr.bf16.mxu0 0
  %144 = vmatpush1.bf16.msra.mxu0 %v131
  %145 = vmatprep.subr.bf16.mxu0 0
  %146 = vmatpush1.bf16.msra.mxu0 %v132
  %147 = vmatprep.subr.bf16.mxu0 0
  %148 = vmatpush1.bf16.msra.mxu0 %v133
  %149 = vmatprep.subr.bf16.mxu0 0
  %150 = vmatpush1.bf16.msra.mxu0 %v134
  %151 = vmatprep.subr.bf16.mxu0 0
  %152 = vmatpush1.bf16.msra.mxu0 0
  %153 = vmatprep.subr.bf16.mxu0 0
  %154 = vmatpush1.bf16.msra.mxu0 0
  %155 = vmatprep.subr.bf16.mxu0 0
  %156 = vmatpush1.bf16.msra.mxu0 0
  %157 = vmatprep.subr.bf16.mxu0 0
  %158 = vmatpush1.bf16.msra.mxu0 0
  %159 = vmatprep.subr.bf16.mxu0 0
  %160 = vmatpush1.bf16.msra.mxu0 0
  %161 = vmatprep.subr.bf16.mxu0 0
  %162 = vmatpush1.bf16.msra.mxu0 0
  %163 = vmatprep.subr.bf16.mxu0 0
  %164 = vmatpush1.bf16.msra.mxu0 0
  %165 = vmatprep.subr.bf16.mxu0 0
  %166 = vmatpush1.bf16.msra.mxu0 0
  %167 = vmatprep.mubr.bf16.mxu0 0
  %168 = vmatmul.mubr.bf16.gmra.mrb[0].mxu0 %v81
  %v169 = vpop.f32.mrb[0].mxu0
  %v170 = vadd.f32 0.0, %v169
  %v171 = vpop.f32.mrb[0].mxu0
  %v172 = vpop.f32.mrb[0].mxu0
  %v173 = vadd.f32 0.0, %v172
  %v174 = vpop.f32.mrb[0].mxu0
  %175 = vdwg.mxu0
  %176 = vmatprep.subr.bf16.mxu0 0
  %177 = vmatpush1.bf16.msra.mxu0 %v87
  %178 = vmatprep.subr.bf16.mxu0 0
  %179 = vmatpush1.bf16.msra.mxu0 %v88
  %180 = vmatprep.subr.bf16.mxu0 0
  %181 = vmatpush1.bf16.msra.mxu0 %v89
  %182 = vmatprep.subr.bf16.mxu0 0
  %183 = vmatpush1.bf16.msra.mxu0 %v90
  %184 = vmatprep.subr.bf16.mxu0 0
  %185 = vmatpush1.bf16.msra.mxu0 %v91
  %186 = vmatprep.subr.bf16.mxu0 0
  %187 = vmatpush1.bf16.msra.mxu0 %v92
  %188 = vmatprep.subr.bf16.mxu0 0
  %189 = vmatpush1.bf16.msra.mxu0 %v93
  %190 = vmatprep.subr.bf16.mxu0 0
  %191 = vmatpush1.bf16.msra.mxu0 %v94
  %192 = vmatprep.subr.bf16.mxu0 0
  %193 = vmatpush1.bf16.msra.mxu0 0
  %194 = vmatprep.subr.bf16.mxu0 0
  %195 = vmatpush1.bf16.msra.mxu0 0
  %196 = vmatprep.subr.bf16.mxu0 0
  %197 = vmatpush1.bf16.msra.mxu0 0
  %198 = vmatprep.subr.bf16.mxu0 0
  %199 = vmatpush1.bf16.msra.mxu0 0
  %200 = vmatprep.subr.bf16.mxu0 0
  %201 = vmatpush1.bf16.msra.mxu0 0
  %202 = vmatprep.subr.bf16.mxu0 0
  %203 = vmatpush1.bf16.msra.mxu0 0
  %204 = vmatprep.subr.bf16.mxu0 0
  %205 = vmatpush1.bf16.msra.mxu0 0
  %206 = vmatprep.subr.bf16.mxu0 0
  %207 = vmatpush1.bf16.msra.mxu0 0
  %208 = vmatprep.mubr.bf16.mxu0 0
  %209 = vmatmul.mubr.bf16.gmra.mrb[0].mxu0 %v81
  %v210 = vpop.f32.mrb[0].mxu0
  %v211 = vadd.f32 %v170, %v210
  %v212 = vpop.f32.mrb[0].mxu0
  %v213 = vpop.f32.mrb[0].mxu0
  %v214 = vadd.f32 %v173, %v213
  %v215 = vpop.f32.mrb[0].mxu0
  %216 = vdwg.mxu0
  %217 = vmatprep.subr.bf16.mxu0 0
  %218 = vmatpush1.bf16.msra.mxu0 %v87
  %219 = vmatprep.subr.bf16.mxu0 0
  %220 = vmatpush1.bf16.msra.mxu0 %v88
  %221 = vmatprep.subr.bf16.mxu0 0
  %222 = vmatpush1.bf16.msra.mxu0 %v89
  %223 = vmatprep.subr.bf16.mxu0 0
  %224 = vmatpush1.bf16.msra.mxu0 %v90
  %225 = vmatprep.subr.bf16.mxu0 0
  %226 = vmatpush1.bf16.msra.mxu0 %v91
  %227 = vmatprep.subr.bf16.mxu0 0
  %228 = vmatpush1.bf16.msra.mxu0 %v92
  %229 = vmatprep.subr.bf16.mxu0 0
  %230 = vmatpush1.bf16.msra.mxu0 %v93
  %231 = vmatprep.subr.bf16.mxu0 0
  %232 = vmatpush1.bf16.msra.mxu0 %v94
  %233 = vmatprep.subr.bf16.mxu0 0
  %234 = vmatpush1.bf16.msra.mxu0 0
  %235 = vmatprep.subr.bf16.mxu0 0
  %236 = vmatpush1.bf16.msra.mxu0 0
  %237 = vmatprep.subr.bf16.mxu0 0
  %238 = vmatpush1.bf16.msra.mxu0 0
  %239 = vmatprep.subr.bf16.mxu0 0
  %240 = vmatpush1.bf16.msra.mxu0 0
  %241 = vmatprep.subr.bf16.mxu0 0
  %242 = vmatpush1.bf16.msra.mxu0 0
  %243 = vmatprep.subr.bf16.mxu0 0
  %244 = vmatpush1.bf16.msra.mxu0 0
  %245 = vmatprep.subr.bf16.mxu0 0
  %246 = vmatpush1.bf16.msra.mxu0 0
  %247 = vmatprep.subr.bf16.mxu0 0
  %248 = vmatpush1.bf16.msra.mxu0 0
  %249 = vmatprep.mubr.bf16.mxu0 0
  %250 = vmatmul.mubr.bf16.gmra.mrb[0].mxu0 %v86
  %v251 = vpop.f32.mrb[0].mxu0
  %v252 = vadd.f32 0.0, %v251
  %v253 = vpop.f32.mrb[0].mxu0
  %v254 = vpop.f32.mrb[0].mxu0
  %v255 = vadd.f32 0.0, %v254
  %v256 = vpop.f32.mrb[0].mxu0
  %257 = vdwg.mxu0
  %v258 = vadd.f32 %v211, %v252
  %v259 = vadd.f32 %v214, %v255
  %v260 = vrot.slane %v30, 7
  %v261 = vrot.slane %v31, 7
  %vm262 = vcmp.lt.s32.totalorder %v33, 1
  %v263 = vsel %vm262, %v260, %v261
  %v264 = vsel %vm262, %v261, %v260
  %v265 = vsel %vm37, %v264, 0.0
  %v266 = vsel %vm38, %v263, 0.0
  %s267 = scalar_lea.vmem %s1, 128
  %v268 = vld [vmem:[%s267] sm:$0xff]
  %v269 = vld [vmem:[%s267 + $0x8] sm:$0xff]
  %v270 = vld [vmem:[%s267 + $0x10] sm:$0xff]
  %v271 = vld [vmem:[%s267 + $0x18] sm:$0xff]
  %v272 = vld [vmem:[%s267 + $0x20] sm:$0xff]
  %v273 = vld [vmem:[%s267 + $0x28] sm:$0xff]
  %v274 = vld [vmem:[%s267 + $0x30] sm:$0xff]
  %v275 = vld [vmem:[%s267 + $0x38] sm:$0xff]
  %v276 = vld [vmem:[%s267 + $0x40] sm:$0xff]
  %v277 = vld [vmem:[%s267 + $0x48] sm:$0xff]
  %v278 = vld [vmem:[%s267 + $0x50] sm:$0xff]
  %v279 = vld [vmem:[%s267 + $0x58] sm:$0xff]
  %v280 = vld [vmem:[%s267 + $0x60] sm:$0xff]
  %v281 = vld [vmem:[%s267 + $0x68] sm:$0xff]
  %v282 = vld [vmem:[%s267 + $0x70] sm:$0xff]
  %v283 = vld [vmem:[%s267 + $0x78] sm:$0xff]
  %v284 = vpack.c.bf16 %v266, %v265
  %v285 = vunpack.c.l.bf16 %v284
  %v286 = vunpack.c.h.bf16 %v284
  %v287 = vsub.f32 %v265, %v285
  %v288 = vsub.f32 %v266, %v286
  %v289 = vpack.c.bf16 %v288, %v287
  %v290 = vpack.c.bf16 %v269, %v268
  %v291 = vpack.c.bf16 %v271, %v270
  %v292 = vpack.c.bf16 %v273, %v272
  %v293 = vpack.c.bf16 %v275, %v274
  %v294 = vpack.c.bf16 %v277, %v276
  %v295 = vpack.c.bf16 %v279, %v278
  %v296 = vpack.c.bf16 %v281, %v280
  %v297 = vpack.c.bf16 %v283, %v282
  %v298 = vunpack.c.l.bf16 %v290
  %v299 = vunpack.c.h.bf16 %v290
  %v300 = vunpack.c.l.bf16 %v291
  %v301 = vunpack.c.h.bf16 %v291
  %v302 = vunpack.c.l.bf16 %v292
  %v303 = vunpack.c.h.bf16 %v292
  %v304 = vunpack.c.l.bf16 %v293
  %v305 = vunpack.c.h.bf16 %v293
  %v306 = vunpack.c.l.bf16 %v294
  %v307 = vunpack.c.h.bf16 %v294
  %v308 = vunpack.c.l.bf16 %v295
  %v309 = vunpack.c.h.bf16 %v295
  %v310 = vunpack.c.l.bf16 %v296
  %v311 = vunpack.c.h.bf16 %v296
  %v312 = vunpack.c.l.bf16 %v297
  %v313 = vunpack.c.h.bf16 %v297
  %v314 = vsub.f32 %v268, %v298
  %v315 = vsub.f32 %v269, %v299
  %v316 = vsub.f32 %v270, %v300
  %v317 = vsub.f32 %v271, %v301
  %v318 = vsub.f32 %v272, %v302
  %v319 = vsub.f32 %v273, %v303
  %v320 = vsub.f32 %v274, %v304
  %v321 = vsub.f32 %v275, %v305
  %v322 = vsub.f32 %v276, %v306
  %v323 = vsub.f32 %v277, %v307
  %v324 = vsub.f32 %v278, %v308
  %v325 = vsub.f32 %v279, %v309
  %v326 = vsub.f32 %v280, %v310
  %v327 = vsub.f32 %v281, %v311
  %v328 = vsub.f32 %v282, %v312
  %v329 = vsub.f32 %v283, %v313
  %v330 = vpack.c.bf16 %v315, %v314
  %v331 = vpack.c.bf16 %v317, %v316
  %v332 = vpack.c.bf16 %v319, %v318
  %v333 = vpack.c.bf16 %v321, %v320
  %v334 = vpack.c.bf16 %v323, %v322
  %v335 = vpack.c.bf16 %v325, %v324
  %v336 = vpack.c.bf16 %v327, %v326
  %v337 = vpack.c.bf16 %v329, %v328
  %338 = vmatprep.subr.bf16.mxu0 0
  %339 = vmatpush1.bf16.msra.mxu0 %v330
  %340 = vmatprep.subr.bf16.mxu0 0
  %341 = vmatpush1.bf16.msra.mxu0 %v331
  %342 = vmatprep.subr.bf16.mxu0 0
  %343 = vmatpush1.bf16.msra.mxu0 %v332
  %344 = vmatprep.subr.bf16.mxu0 0
  %345 = vmatpush1.bf16.msra.mxu0 %v333
  %346 = vmatprep.subr.bf16.mxu0 0
  %347 = vmatpush1.bf16.msra.mxu0 %v334
  %348 = vmatprep.subr.bf16.mxu0 0
  %349 = vmatpush1.bf16.msra.mxu0 %v335
  %350 = vmatprep.subr.bf16.mxu0 0
  %351 = vmatpush1.bf16.msra.mxu0 %v336
  %352 = vmatprep.subr.bf16.mxu0 0
  %353 = vmatpush1.bf16.msra.mxu0 %v337
  %354 = vmatprep.subr.bf16.mxu0 0
  %355 = vmatpush1.bf16.msra.mxu0 0
  %356 = vmatprep.subr.bf16.mxu0 0
  %357 = vmatpush1.bf16.msra.mxu0 0
  %358 = vmatprep.subr.bf16.mxu0 0
  %359 = vmatpush1.bf16.msra.mxu0 0
  %360 = vmatprep.subr.bf16.mxu0 0
  %361 = vmatpush1.bf16.msra.mxu0 0
  %362 = vmatprep.subr.bf16.mxu0 0
  %363 = vmatpush1.bf16.msra.mxu0 0
  %364 = vmatprep.subr.bf16.mxu0 0
  %365 = vmatpush1.bf16.msra.mxu0 0
  %366 = vmatprep.subr.bf16.mxu0 0
  %367 = vmatpush1.bf16.msra.mxu0 0
  %368 = vmatprep.subr.bf16.mxu0 0
  %369 = vmatpush1.bf16.msra.mxu0 0
  %370 = vmatprep.mubr.bf16.mxu0 0
  %371 = vmatmul.mubr.bf16.gmra.mrb[0].mxu0 %v284
  %v372 = vpop.f32.mrb[0].mxu0
  %v373 = vadd.f32 0.0, %v372
  %v374 = vpop.f32.mrb[0].mxu0
  %v375 = vpop.f32.mrb[0].mxu0
  %v376 = vadd.f32 0.0, %v375
  %v377 = vpop.f32.mrb[0].mxu0
  %378 = vdwg.mxu0
  %379 = vmatprep.subr.bf16.mxu0 0
  %380 = vmatpush1.bf16.msra.mxu0 %v290
  %381 = vmatprep.subr.bf16.mxu0 0
  %382 = vmatpush1.bf16.msra.mxu0 %v291
  %383 = vmatprep.subr.bf16.mxu0 0
  %384 = vmatpush1.bf16.msra.mxu0 %v292
  %385 = vmatprep.subr.bf16.mxu0 0
  %386 = vmatpush1.bf16.msra.mxu0 %v293
  %387 = vmatprep.subr.bf16.mxu0 0
  %388 = vmatpush1.bf16.msra.mxu0 %v294
  %389 = vmatprep.subr.bf16.mxu0 0
  %390 = vmatpush1.bf16.msra.mxu0 %v295
  %391 = vmatprep.subr.bf16.mxu0 0
  %392 = vmatpush1.bf16.msra.mxu0 %v296
  %393 = vmatprep.subr.bf16.mxu0 0
  %394 = vmatpush1.bf16.msra.mxu0 %v297
  %395 = vmatprep.subr.bf16.mxu0 0
  %396 = vmatpush1.bf16.msra.mxu0 0
  %397 = vmatprep.subr.bf16.mxu0 0
  %398 = vmatpush1.bf16.msra.mxu0 0
  %399 = vmatprep.subr.bf16.mxu0 0
  %400 = vmatpush1.bf16.msra.mxu0 0
  %401 = vmatprep.subr.bf16.mxu0 0
  %402 = vmatpush1.bf16.msra.mxu0 0
  %403 = vmatprep.subr.bf16.mxu0 0
  %404 = vmatpush1.bf16.msra.mxu0 0
  %405 = vmatprep.subr.bf16.mxu0 0
  %406 = vmatpush1.bf16.msra.mxu0 0
  %407 = vmatprep.subr.bf16.mxu0 0
  %408 = vmatpush1.bf16.msra.mxu0 0
  %409 = vmatprep.subr.bf16.mxu0 0
  %410 = vmatpush1.bf16.msra.mxu0 0
  %411 = vmatprep.mubr.bf16.mxu0 0
  %412 = vmatmul.mubr.bf16.gmra.mrb[0].mxu0 %v284
  %v413 = vpop.f32.mrb[0].mxu0
  %v414 = vadd.f32 %v373, %v413
  %v415 = vpop.f32.mrb[0].mxu0
  %v416 = vpop.f32.mrb[0].mxu0
  %v417 = vadd.f32 %v376, %v416
  %v418 = vpop.f32.mrb[0].mxu0
  %419 = vdwg.mxu0
  %420 = vmatprep.subr.bf16.mxu0 0
  %421 = vmatpush1.bf16.msra.mxu0 %v290
  %422 = vmatprep.subr.bf16.mxu0 0
  %423 = vmatpush1.bf16.msra.mxu0 %v291
  %424 = vmatprep.subr.bf16.mxu0 0
  %425 = vmatpush1.bf16.msra.mxu0 %v292
  %426 = vmatprep.subr.bf16.mxu0 0
  %427 = vmatpush1.bf16.msra.mxu0 %v293
  %428 = vmatprep.subr.bf16.mxu0 0
  %429 = vmatpush1.bf16.msra.mxu0 %v294
  %430 = vmatprep.subr.bf16.mxu0 0
  %431 = vmatpush1.bf16.msra.mxu0 %v295
  %432 = vmatprep.subr.bf16.mxu0 0
  %433 = vmatpush1.bf16.msra.mxu0 %v296
  %434 = vmatprep.subr.bf16.mxu0 0
  %435 = vmatpush1.bf16.msra.mxu0 %v297
  %436 = vmatprep.subr.bf16.mxu0 0
  %437 = vmatpush1.bf16.msra.mxu0 0
  %438 = vmatprep.subr.bf16.mxu0 0
  %439 = vmatpush1.bf16.msra.mxu0 0
  %440 = vmatprep.subr.bf16.mxu0 0
  %441 = vmatpush1.bf16.msra.mxu0 0
  %442 = vmatprep.subr.bf16.mxu0 0
  %443 = vmatpush1.bf16.msra.mxu0 0
  %444 = vmatprep.subr.bf16.mxu0 0
  %445 = vmatpush1.bf16.msra.mxu0 0
  %446 = vmatprep.subr.bf16.mxu0 0
  %447 = vmatpush1.bf16.msra.mxu0 0
  %448 = vmatprep.subr.bf16.mxu0 0
  %449 = vmatpush1.bf16.msra.mxu0 0
  %450 = vmatprep.subr.bf16.mxu0 0
  %451 = vmatpush1.bf16.msra.mxu0 0
  %452 = vmatprep.mubr.bf16.mxu0 0
  %453 = vmatmul.mubr.bf16.gmra.mrb[0].mxu0 %v289
  %v454 = vpop.f32.mrb[0].mxu0
  %v455 = vadd.f32 0.0, %v454
  %v456 = vpop.f32.mrb[0].mxu0
  %v457 = vpop.f32.mrb[0].mxu0
  %v458 = vadd.f32 0.0, %v457
  %v459 = vpop.f32.mrb[0].mxu0
  %460 = vdwg.mxu0
  %v461 = vadd.f32 %v414, %v455
  %v462 = vadd.f32 %v417, %v458
  %v463 = vadd.f32 %v258, %v461
  %v464 = vadd.f32 %v259, %v462
  %v465 = vrot.slane %v30, 1
  %v466 = vrot.slane %v31, 1
  %vm467 = vcmp.lt.s32.totalorder %v33, 7
  %v468 = vsel %vm467, %v465, %v466
  %v469 = vsel %vm467, %v466, %v465
  %v470 = vsel %vm39, %v468, 0.0
  %v471 = vsel %vm40, %v469, 0.0
  %s472 = scalar_lea.vmem %s1, 256
  %v473 = vld [vmem:[%s472] sm:$0xff]
  %v474 = vld [vmem:[%s472 + $0x8] sm:$0xff]
  %v475 = vld [vmem:[%s472 + $0x10] sm:$0xff]
  %v476 = vld [vmem:[%s472 + $0x18] sm:$0xff]
  %v477 = vld [vmem:[%s472 + $0x20] sm:$0xff]
  %v478 = vld [vmem:[%s472 + $0x28] sm:$0xff]
  %v479 = vld [vmem:[%s472 + $0x30] sm:$0xff]
  %v480 = vld [vmem:[%s472 + $0x38] sm:$0xff]
  %v481 = vld [vmem:[%s472 + $0x40] sm:$0xff]
  %v482 = vld [vmem:[%s472 + $0x48] sm:$0xff]
  %v483 = vld [vmem:[%s472 + $0x50] sm:$0xff]
  %v484 = vld [vmem:[%s472 + $0x58] sm:$0xff]
  %v485 = vld [vmem:[%s472 + $0x60] sm:$0xff]
  %v486 = vld [vmem:[%s472 + $0x68] sm:$0xff]
  %v487 = vld [vmem:[%s472 + $0x70] sm:$0xff]
  %v488 = vld [vmem:[%s472 + $0x78] sm:$0xff]
  %v489 = vpack.c.bf16 %v471, %v470
  %v490 = vunpack.c.l.bf16 %v489
  %v491 = vunpack.c.h.bf16 %v489
  %v492 = vsub.f32 %v470, %v490
  %v493 = vsub.f32 %v471, %v491
  %v494 = vpack.c.bf16 %v493, %v492
  %v495 = vpack.c.bf16 %v474, %v473
  %v496 = vpack.c.bf16 %v476, %v475
  %v497 = vpack.c.bf16 %v478, %v477
  %v498 = vpack.c.bf16 %v480, %v479
  %v499 = vpack.c.bf16 %v482, %v481
  %v500 = vpack.c.bf16 %v484, %v483
  %v501 = vpack.c.bf16 %v486, %v485
  %v502 = vpack.c.bf16 %v488, %v487
  %v503 = vunpack.c.l.bf16 %v495
  %v504 = vunpack.c.h.bf16 %v495
  %v505 = vunpack.c.l.bf16 %v496
  %v506 = vunpack.c.h.bf16 %v496
  %v507 = vunpack.c.l.bf16 %v497
  %v508 = vunpack.c.h.bf16 %v497
  %v509 = vunpack.c.l.bf16 %v498
  %v510 = vunpack.c.h.bf16 %v498
  %v511 = vunpack.c.l.bf16 %v499
  %v512 = vunpack.c.h.bf16 %v499
  %v513 = vunpack.c.l.bf16 %v500
  %v514 = vunpack.c.h.bf16 %v500
  %v515 = vunpack.c.l.bf16 %v501
  %v516 = vunpack.c.h.bf16 %v501
  %v517 = vunpack.c.l.bf16 %v502
  %v518 = vunpack.c.h.bf16 %v502
  %v519 = vsub.f32 %v473, %v503
  %v520 = vsub.f32 %v474, %v504
  %v521 = vsub.f32 %v475, %v505
  %v522 = vsub.f32 %v476, %v506
  %v523 = vsub.f32 %v477, %v507
  %v524 = vsub.f32 %v478, %v508
  %v525 = vsub.f32 %v479, %v509
  %v526 = vsub.f32 %v480, %v510
  %v527 = vsub.f32 %v481, %v511
  %v528 = vsub.f32 %v482, %v512
  %v529 = vsub.f32 %v483, %v513
  %v530 = vsub.f32 %v484, %v514
  %v531 = vsub.f32 %v485, %v515
  %v532 = vsub.f32 %v486, %v516
  %v533 = vsub.f32 %v487, %v517
  %v534 = vsub.f32 %v488, %v518
  %v535 = vpack.c.bf16 %v520, %v519
  %v536 = vpack.c.bf16 %v522, %v521
  %v537 = vpack.c.bf16 %v524, %v523
  %v538 = vpack.c.bf16 %v526, %v525
  %v539 = vpack.c.bf16 %v528, %v527
  %v540 = vpack.c.bf16 %v530, %v529
  %v541 = vpack.c.bf16 %v532, %v531
  %v542 = vpack.c.bf16 %v534, %v533
  %543 = vmatprep.subr.bf16.mxu0 0
  %544 = vmatpush1.bf16.msra.mxu0 %v535
  %545 = vmatprep.subr.bf16.mxu0 0
  %546 = vmatpush1.bf16.msra.mxu0 %v536
  %547 = vmatprep.subr.bf16.mxu0 0
  %548 = vmatpush1.bf16.msra.mxu0 %v537
  %549 = vmatprep.subr.bf16.mxu0 0
  %550 = vmatpush1.bf16.msra.mxu0 %v538
  %551 = vmatprep.subr.bf16.mxu0 0
  %552 = vmatpush1.bf16.msra.mxu0 %v539
  %553 = vmatprep.subr.bf16.mxu0 0
  %554 = vmatpush1.bf16.msra.mxu0 %v540
  %555 = vmatprep.subr.bf16.mxu0 0
  %556 = vmatpush1.bf16.msra.mxu0 %v541
  %557 = vmatprep.subr.bf16.mxu0 0
  %558 = vmatpush1.bf16.msra.mxu0 %v542
  %559 = vmatprep.subr.bf16.mxu0 0
  %560 = vmatpush1.bf16.msra.mxu0 0
  %561 = vmatprep.subr.bf16.mxu0 0
  %562 = vmatpush1.bf16.msra.mxu0 0
  %563 = vmatprep.subr.bf16.mxu0 0
  %564 = vmatpush1.bf16.msra.mxu0 0
  %565 = vmatprep.subr.bf16.mxu0 0
  %566 = vmatpush1.bf16.msra.mxu0 0
  %567 = vmatprep.subr.bf16.mxu0 0
  %568 = vmatpush1.bf16.msra.mxu0 0
  %569 = vmatprep.subr.bf16.mxu0 0
  %570 = vmatpush1.bf16.msra.mxu0 0
  %571 = vmatprep.subr.bf16.mxu0 0
  %572 = vmatpush1.bf16.msra.mxu0 0
  %573 = vmatprep.subr.bf16.mxu0 0
  %574 = vmatpush1.bf16.msra.mxu0 0
  %575 = vmatprep.mubr.bf16.mxu0 0
  %576 = vmatmul.mubr.bf16.gmra.mrb[0].mxu0 %v489
  %v577 = vpop.f32.mrb[0].mxu0
  %v578 = vadd.f32 0.0, %v577
  %v579 = vpop.f32.mrb[0].mxu0
  %v580 = vpop.f32.mrb[0].mxu0
  %v581 = vadd.f32 0.0, %v580
  %v582 = vpop.f32.mrb[0].mxu0
  %583 = vdwg.mxu0
  %584 = vmatprep.subr.bf16.mxu0 0
  %585 = vmatpush1.bf16.msra.mxu0 %v495
  %586 = vmatprep.subr.bf16.mxu0 0
  %587 = vmatpush1.bf16.msra.mxu0 %v496
  %588 = vmatprep.subr.bf16.mxu0 0
  %589 = vmatpush1.bf16.msra.mxu0 %v497
  %590 = vmatprep.subr.bf16.mxu0 0
  %591 = vmatpush1.bf16.msra.mxu0 %v498
  %592 = vmatprep.subr.bf16.mxu0 0
  %593 = vmatpush1.bf16.msra.mxu0 %v499
  %594 = vmatprep.subr.bf16.mxu0 0
  %595 = vmatpush1.bf16.msra.mxu0 %v500
  %596 = vmatprep.subr.bf16.mxu0 0
  %597 = vmatpush1.bf16.msra.mxu0 %v501
  %598 = vmatprep.subr.bf16.mxu0 0
  %599 = vmatpush1.bf16.msra.mxu0 %v502
  %600 = vmatprep.subr.bf16.mxu0 0
  %601 = vmatpush1.bf16.msra.mxu0 0
  %602 = vmatprep.subr.bf16.mxu0 0
  %603 = vmatpush1.bf16.msra.mxu0 0
  %604 = vmatprep.subr.bf16.mxu0 0
  %605 = vmatpush1.bf16.msra.mxu0 0
  %606 = vmatprep.subr.bf16.mxu0 0
  %607 = vmatpush1.bf16.msra.mxu0 0
  %608 = vmatprep.subr.bf16.mxu0 0
  %609 = vmatpush1.bf16.msra.mxu0 0
  %610 = vmatprep.subr.bf16.mxu0 0
  %611 = vmatpush1.bf16.msra.mxu0 0
  %612 = vmatprep.subr.bf16.mxu0 0
  %613 = vmatpush1.bf16.msra.mxu0 0
  %614 = vmatprep.subr.bf16.mxu0 0
  %615 = vmatpush1.bf16.msra.mxu0 0
  %616 = vmatprep.mubr.bf16.mxu0 0
  %617 = vmatmul.mubr.bf16.gmra.mrb[0].mxu0 %v489
  %v618 = vpop.f32.mrb[0].mxu0
  %v619 = vadd.f32 %v578, %v618
  %v620 = vpop.f32.mrb[0].mxu0
  %v621 = vpop.f32.mrb[0].mxu0
  %v622 = vadd.f32 %v581, %v621
  %v623 = vpop.f32.mrb[0].mxu0
  %624 = vdwg.mxu0
  %625 = vmatprep.subr.bf16.mxu0 0
  %626 = vmatpush1.bf16.msra.mxu0 %v495
  %627 = vmatprep.subr.bf16.mxu0 0
  %628 = vmatpush1.bf16.msra.mxu0 %v496
  %629 = vmatprep.subr.bf16.mxu0 0
  %630 = vmatpush1.bf16.msra.mxu0 %v497
  %631 = vmatprep.subr.bf16.mxu0 0
  %632 = vmatpush1.bf16.msra.mxu0 %v498
  %633 = vmatprep.subr.bf16.mxu0 0
  %634 = vmatpush1.bf16.msra.mxu0 %v499
  %635 = vmatprep.subr.bf16.mxu0 0
  %636 = vmatpush1.bf16.msra.mxu0 %v500
  %637 = vmatprep.subr.bf16.mxu0 0
  %638 = vmatpush1.bf16.msra.mxu0 %v501
  %639 = vmatprep.subr.bf16.mxu0 0
  %640 = vmatpush1.bf16.msra.mxu0 %v502
  %641 = vmatprep.subr.bf16.mxu0 0
  %642 = vmatpush1.bf16.msra.mxu0 0
  %643 = vmatprep.subr.bf16.mxu0 0
  %644 = vmatpush1.bf16.msra.mxu0 0
  %645 = vmatprep.subr.bf16.mxu0 0
  %646 = vmatpush1.bf16.msra.mxu0 0
  %647 = vmatprep.subr.bf16.mxu0 0
  %648 = vmatpush1.bf16.msra.mxu0 0
  %649 = vmatprep.subr.bf16.mxu0 0
  %650 = vmatpush1.bf16.msra.mxu0 0
  %651 = vmatprep.subr.bf16.mxu0 0
  %652 = vmatpush1.bf16.msra.mxu0 0
  %653 = vmatprep.subr.bf16.mxu0 0
  %654 = vmatpush1.bf16.msra.mxu0 0
  %655 = vmatprep.subr.bf16.mxu0 0
  %656 = vmatpush1.bf16.msra.mxu0 0
  %657 = vmatprep.mubr.bf16.mxu0 0
  %658 = vmatmul.mubr.bf16.gmra.mrb[0].mxu0 %v494
  %v659 = vpop.f32.mrb[0].mxu0
  %v660 = vadd.f32 0.0, %v659
  %v661 = vpop.f32.mrb[0].mxu0
  %v662 = vpop.f32.mrb[0].mxu0
  %v663 = vadd.f32 0.0, %v662
  %v664 = vpop.f32.mrb[0].mxu0
  %665 = vdwg.mxu0
  %v666 = vadd.f32 %v619, %v660
  %v667 = vadd.f32 %v622, %v663
  %v668 = vadd.f32 %v463, %v666
  %v669 = vadd.f32 %v464, %v667
  %v670 = vld [vmem:[%s4] sm:$0x1]
  %v671 = vld [vmem:[%s5] sm:$0x1]
  %v672 = vadd.f32 %v668, %v669
  %v673 = vrot.slane %v672, 4
  %v674 = vadd.f32 %v672, %v673
  %v675 = vrot.slane %v674, 2
  %v676 = vadd.f32 %v674, %v675
  %v677 = vrot.slane %v676, 1
  %v678 = vadd.f32 %v676, %v677
  %v679 = vpack.c.bf16 %v678, %v678
  %v680 = vunpack.c.l.bf16 %v679
  %v681 = vsub.f32 %v678, %v680
  %v682 = vpack.c.bf16 %v681, %v681
  %683 = vmatprep.subr.bf16.mxu0 0
  %684 = vmatpush1.bf16.msra.mxu0 %v57
  %685 = vmatprep.subr.bf16.mxu0 0
  %686 = vmatpush1.bf16.msra.mxu0 %v58
  %687 = vmatprep.subr.bf16.mxu0 0
  %688 = vmatpush1.bf16.msra.mxu0 %v59
  %689 = vmatprep.subr.bf16.mxu0 0
  %690 = vmatpush1.bf16.msra.mxu0 %v60
  %691 = vmatprep.subr.bf16.mxu0 0
  %692 = vmatpush1.bf16.msra.mxu0 %v61
  %693 = vmatprep.subr.bf16.mxu0 0
  %694 = vmatpush1.bf16.msra.mxu0 %v62
  %695 = vmatprep.subr.bf16.mxu0 0
  %696 = vmatpush1.bf16.msra.mxu0 %v63
  %697 = vmatprep.subr.bf16.mxu0 0
  %698 = vmatpush1.bf16.msra.mxu0 %v64
  %699 = vmatprep.subr.bf16.mxu0 0
  %700 = vmatpush1.bf16.msra.mxu0 0
  %701 = vmatprep.subr.bf16.mxu0 0
  %702 = vmatpush1.bf16.msra.mxu0 0
  %703 = vmatprep.subr.bf16.mxu0 0
  %704 = vmatpush1.bf16.msra.mxu0 0
  %705 = vmatprep.subr.bf16.mxu0 0
  %706 = vmatpush1.bf16.msra.mxu0 0
  %707 = vmatprep.subr.bf16.mxu0 0
  %708 = vmatpush1.bf16.msra.mxu0 0
  %709 = vmatprep.subr.bf16.mxu0 0
  %710 = vmatpush1.bf16.msra.mxu0 0
  %711 = vmatprep.subr.bf16.mxu0 0
  %712 = vmatpush1.bf16.msra.mxu0 0
  %713 = vmatprep.subr.bf16.mxu0 0
  %714 = vmatpush1.bf16.msra.mxu0 0
  %715 = vmatprep.mubr.bf16.mxu0 0
  %716 = vmatmul.mubr.bf16.gmra.mrb[0].mxu0 %v682
  %v717 = vpop.f32.mrb[0].mxu0
  %v718 = vadd.f32 0.0, %v717
  %v719 = vpop.f32.mrb[0].mxu0
  %v720 = vpop.f32.mrb[0].mxu0
  %v721 = vpop.f32.mrb[0].mxu0
  %722 = vdwg.mxu0
  %723 = vmatprep.subr.bf16.mxu0 0
  %724 = vmatpush1.bf16.msra.mxu0 %v57
  %725 = vmatprep.subr.bf16.mxu0 0
  %726 = vmatpush1.bf16.msra.mxu0 %v58
  %727 = vmatprep.subr.bf16.mxu0 0
  %728 = vmatpush1.bf16.msra.mxu0 %v59
  %729 = vmatprep.subr.bf16.mxu0 0
  %730 = vmatpush1.bf16.msra.mxu0 %v60
  %731 = vmatprep.subr.bf16.mxu0 0
  %732 = vmatpush1.bf16.msra.mxu0 %v61
  %733 = vmatprep.subr.bf16.mxu0 0
  %734 = vmatpush1.bf16.msra.mxu0 %v62
  %735 = vmatprep.subr.bf16.mxu0 0
  %736 = vmatpush1.bf16.msra.mxu0 %v63
  %737 = vmatprep.subr.bf16.mxu0 0
  %738 = vmatpush1.bf16.msra.mxu0 %v64
  %739 = vmatprep.subr.bf16.mxu0 0
  %740 = vmatpush1.bf16.msra.mxu0 0
  %741 = vmatprep.subr.bf16.mxu0 0
  %742 = vmatpush1.bf16.msra.mxu0 0
  %743 = vmatprep.subr.bf16.mxu0 0
  %744 = vmatpush1.bf16.msra.mxu0 0
  %745 = vmatprep.subr.bf16.mxu0 0
  %746 = vmatpush1.bf16.msra.mxu0 0
  %747 = vmatprep.subr.bf16.mxu0 0
  %748 = vmatpush1.bf16.msra.mxu0 0
  %749 = vmatprep.subr.bf16.mxu0 0
  %750 = vmatpush1.bf16.msra.mxu0 0
  %751 = vmatprep.subr.bf16.mxu0 0
  %752 = vmatpush1.bf16.msra.mxu0 0
  %753 = vmatprep.subr.bf16.mxu0 0
  %754 = vmatpush1.bf16.msra.mxu0 0
  %755 = vmatprep.mubr.bf16.mxu0 0
  %756 = vmatmul.mubr.bf16.gmra.mrb[0].mxu0 %v679
  %v757 = vpop.f32.mrb[0].mxu0
  %v758 = vadd.f32 %v718, %v757
  %v759 = vpop.f32.mrb[0].mxu0
  %v760 = vpop.f32.mrb[0].mxu0
  %v761 = vpop.f32.mrb[0].mxu0
  %762 = vdwg.mxu0
  %v763 = vmul.f32 %v758, 0.001953125
  %v764 = vmul.f32 %v668, %v668
  %v765 = vmul.f32 %v669, %v669
  %v766 = vadd.f32 %v764, %v765
  %v767 = vrot.slane %v766, 4
  %v768 = vadd.f32 %v766, %v767
  %v769 = vrot.slane %v768, 2
  %v770 = vadd.f32 %v768, %v769
  %v771 = vrot.slane %v770, 1
  %v772 = vadd.f32 %v770, %v771
  %v773 = vpack.c.bf16 %v772, %v772
  %v774 = vunpack.c.l.bf16 %v773
  %v775 = vsub.f32 %v772, %v774
  %v776 = vpack.c.bf16 %v775, %v775
  %777 = vmatprep.subr.bf16.mxu0 0
  %778 = vmatpush1.bf16.msra.mxu0 %v57
  %779 = vmatprep.subr.bf16.mxu0 0
  %780 = vmatpush1.bf16.msra.mxu0 %v58
  %781 = vmatprep.subr.bf16.mxu0 0
  %782 = vmatpush1.bf16.msra.mxu0 %v59
  %783 = vmatprep.subr.bf16.mxu0 0
  %784 = vmatpush1.bf16.msra.mxu0 %v60
  %785 = vmatprep.subr.bf16.mxu0 0
  %786 = vmatpush1.bf16.msra.mxu0 %v61
  %787 = vmatprep.subr.bf16.mxu0 0
  %788 = vmatpush1.bf16.msra.mxu0 %v62
  %789 = vmatprep.subr.bf16.mxu0 0
  %790 = vmatpush1.bf16.msra.mxu0 %v63
  %791 = vmatprep.subr.bf16.mxu0 0
  %792 = vmatpush1.bf16.msra.mxu0 %v64
  %793 = vmatprep.subr.bf16.mxu0 0
  %794 = vmatpush1.bf16.msra.mxu0 0
  %795 = vmatprep.subr.bf16.mxu0 0
  %796 = vmatpush1.bf16.msra.mxu0 0
  %797 = vmatprep.subr.bf16.mxu0 0
  %798 = vmatpush1.bf16.msra.mxu0 0
  %799 = vmatprep.subr.bf16.mxu0 0
  %800 = vmatpush1.bf16.msra.mxu0 0
  %801 = vmatprep.subr.bf16.mxu0 0
  %802 = vmatpush1.bf16.msra.mxu0 0
  %803 = vmatprep.subr.bf16.mxu0 0
  %804 = vmatpush1.bf16.msra.mxu0 0
  %805 = vmatprep.subr.bf16.mxu0 0
  %806 = vmatpush1.bf16.msra.mxu0 0
  %807 = vmatprep.subr.bf16.mxu0 0
  %808 = vmatpush1.bf16.msra.mxu0 0
  %809 = vmatprep.mubr.bf16.mxu0 0
  %810 = vmatmul.mubr.bf16.gmra.mrb[0].mxu0 %v776
  %v811 = vpop.f32.mrb[0].mxu0
  %v812 = vadd.f32 0.0, %v811
  %v813 = vpop.f32.mrb[0].mxu0
  %v814 = vpop.f32.mrb[0].mxu0
  %v815 = vpop.f32.mrb[0].mxu0
  %816 = vdwg.mxu0
  %817 = vmatprep.subr.bf16.mxu0 0
  %818 = vmatpush1.bf16.msra.mxu0 %v57
  %819 = vmatprep.subr.bf16.mxu0 0
  %820 = vmatpush1.bf16.msra.mxu0 %v58
  %821 = vmatprep.subr.bf16.mxu0 0
  %822 = vmatpush1.bf16.msra.mxu0 %v59
  %823 = vmatprep.subr.bf16.mxu0 0
  %824 = vmatpush1.bf16.msra.mxu0 %v60
  %825 = vmatprep.subr.bf16.mxu0 0
  %826 = vmatpush1.bf16.msra.mxu0 %v61
  %827 = vmatprep.subr.bf16.mxu0 0
  %828 = vmatpush1.bf16.msra.mxu0 %v62
  %829 = vmatprep.subr.bf16.mxu0 0
  %830 = vmatpush1.bf16.msra.mxu0 %v63
  %831 = vmatprep.subr.bf16.mxu0 0
  %832 = vmatpush1.bf16.msra.mxu0 %v64
  %833 = vmatprep.subr.bf16.mxu0 0
  %834 = vmatpush1.bf16.msra.mxu0 0
  %835 = vmatprep.subr.bf16.mxu0 0
  %836 = vmatpush1.bf16.msra.mxu0 0
  %837 = vmatprep.subr.bf16.mxu0 0
  %838 = vmatpush1.bf16.msra.mxu0 0
  %839 = vmatprep.subr.bf16.mxu0 0
  %840 = vmatpush1.bf16.msra.mxu0 0
  %841 = vmatprep.subr.bf16.mxu0 0
  %842 = vmatpush1.bf16.msra.mxu0 0
  %843 = vmatprep.subr.bf16.mxu0 0
  %844 = vmatpush1.bf16.msra.mxu0 0
  %845 = vmatprep.subr.bf16.mxu0 0
  %846 = vmatpush1.bf16.msra.mxu0 0
  %847 = vmatprep.subr.bf16.mxu0 0
  %848 = vmatpush1.bf16.msra.mxu0 0
  %849 = vmatprep.mubr.bf16.mxu0 0
  %850 = vmatmul.mubr.bf16.gmra.mrb[0].mxu0 %v773
  %v851 = vpop.f32.mrb[0].mxu0
  %v852 = vadd.f32 %v812, %v851
  %v853 = vpop.f32.mrb[0].mxu0
  %v854 = vpop.f32.mrb[0].mxu0
  %v855 = vpop.f32.mrb[0].mxu0
  %856 = vdwg.mxu0
  %v857 = vmul.f32 %v852, 0.001953125
  %v858 = vmul.f32 %v763, %v763
  %v859 = vsub.f32 %v857, %v858
  %v860 = vmax.f32 %v859, 0.0
  %v861 = vlaneseq
  %v862 = vshrl.u32 %v861, 7
  %v863 = vsub.s32 0, %v862
  %v864 = vrot.slane %v763, %v863
  %v865 = vsub.f32 %v668, %v864
  %v866 = vsub.f32 %v669, %v864
  %v867 = vadd.f32 %v860, 1e-05
  %v868 = vrsqrt.pop %v867
  %v869 = vlaneseq
  %v870 = vshrl.u32 %v869, 7
  %v871 = vsub.s32 0, %v870
  %v872 = vrot.slane %v868, %v871
  %v873 = vmul.f32 %v865, %v872
  %v874 = vmul.f32 %v866, %v872
  %v876 = vlaneseq
  %v877 = vshrl.u32 %v876, 7
  %v878 = vsub.s32 0, %v877
  %v879 = vrot.slane %v670, %v878
  %v881 = vmul.f32 %v873, %v879
  %v882 = vmul.f32 %v874, %v879
  %v884 = vlaneseq
  %v885 = vshrl.u32 %v884, 7
  %v886 = vsub.s32 0, %v885
  %v887 = vrot.slane %v671, %v886
  %v889 = vadd.f32 %v881, %v887
  %v890 = vadd.f32 %v882, %v887
  %v891 = vmax.f32 %v889, 0.0
  %v892 = vmax.f32 %v890, 0.0
  %v893 = vld [vmem:[%s2] sm:$0xff]
  %v894 = vld [vmem:[%s2 + $0x8] sm:$0xff]
  %v895 = vld [vmem:[%s2 + $0x10] sm:$0xff]
  %v896 = vld [vmem:[%s2 + $0x18] sm:$0xff]
  %v897 = vld [vmem:[%s2 + $0x20] sm:$0xff]
  %v898 = vld [vmem:[%s2 + $0x28] sm:$0xff]
  %v899 = vld [vmem:[%s2 + $0x30] sm:$0xff]
  %v900 = vld [vmem:[%s2 + $0x38] sm:$0xff]
  %v901 = vld [vmem:[%s2 + $0x40] sm:$0xff]
  %v902 = vld [vmem:[%s2 + $0x48] sm:$0xff]
  %v903 = vld [vmem:[%s2 + $0x50] sm:$0xff]
  %v904 = vld [vmem:[%s2 + $0x58] sm:$0xff]
  %v905 = vld [vmem:[%s2 + $0x60] sm:$0xff]
  %v906 = vld [vmem:[%s2 + $0x68] sm:$0xff]
  %v907 = vld [vmem:[%s2 + $0x70] sm:$0xff]
  %v908 = vld [vmem:[%s2 + $0x78] sm:$0xff]
  %v909 = vpack.c.bf16 %v892, %v891
  %v910 = vunpack.c.l.bf16 %v909
  %v911 = vunpack.c.h.bf16 %v909
  %v912 = vsub.f32 %v891, %v910
  %v913 = vsub.f32 %v892, %v911
  %v914 = vpack.c.bf16 %v913, %v912
  %v915 = vpack.c.bf16 %v894, %v893
  %v916 = vpack.c.bf16 %v896, %v895
  %v917 = vpack.c.bf16 %v898, %v897
  %v918 = vpack.c.bf16 %v900, %v899
  %v919 = vpack.c.bf16 %v902, %v901
  %v920 = vpack.c.bf16 %v904, %v903
  %v921 = vpack.c.bf16 %v906, %v905
  %v922 = vpack.c.bf16 %v908, %v907
  %v923 = vunpack.c.l.bf16 %v915
  %v924 = vunpack.c.h.bf16 %v915
  %v925 = vunpack.c.l.bf16 %v916
  %v926 = vunpack.c.h.bf16 %v916
  %v927 = vunpack.c.l.bf16 %v917
  %v928 = vunpack.c.h.bf16 %v917
  %v929 = vunpack.c.l.bf16 %v918
  %v930 = vunpack.c.h.bf16 %v918
  %v931 = vunpack.c.l.bf16 %v919
  %v932 = vunpack.c.h.bf16 %v919
  %v933 = vunpack.c.l.bf16 %v920
  %v934 = vunpack.c.h.bf16 %v920
  %v935 = vunpack.c.l.bf16 %v921
  %v936 = vunpack.c.h.bf16 %v921
  %v937 = vunpack.c.l.bf16 %v922
  %v938 = vunpack.c.h.bf16 %v922
  %v939 = vsub.f32 %v893, %v923
  %v940 = vsub.f32 %v894, %v924
  %v941 = vsub.f32 %v895, %v925
  %v942 = vsub.f32 %v896, %v926
  %v943 = vsub.f32 %v897, %v927
  %v944 = vsub.f32 %v898, %v928
  %v945 = vsub.f32 %v899, %v929
  %v946 = vsub.f32 %v900, %v930
  %v947 = vsub.f32 %v901, %v931
  %v948 = vsub.f32 %v902, %v932
  %v949 = vsub.f32 %v903, %v933
  %v950 = vsub.f32 %v904, %v934
  %v951 = vsub.f32 %v905, %v935
  %v952 = vsub.f32 %v906, %v936
  %v953 = vsub.f32 %v907, %v937
  %v954 = vsub.f32 %v908, %v938
  %v955 = vpack.c.bf16 %v940, %v939
  %v956 = vpack.c.bf16 %v942, %v941
  %v957 = vpack.c.bf16 %v944, %v943
  %v958 = vpack.c.bf16 %v946, %v945
  %v959 = vpack.c.bf16 %v948, %v947
  %v960 = vpack.c.bf16 %v950, %v949
  %v961 = vpack.c.bf16 %v952, %v951
  %v962 = vpack.c.bf16 %v954, %v953
  %963 = vmatprep.subr.bf16.mxu0 0
  %964 = vmatpush1.bf16.msra.mxu0 %v955
  %965 = vmatprep.subr.bf16.mxu0 0
  %966 = vmatpush1.bf16.msra.mxu0 %v956
  %967 = vmatprep.subr.bf16.mxu0 0
  %968 = vmatpush1.bf16.msra.mxu0 %v957
  %969 = vmatprep.subr.bf16.mxu0 0
  %970 = vmatpush1.bf16.msra.mxu0 %v958
  %971 = vmatprep.subr.bf16.mxu0 0
  %972 = vmatpush1.bf16.msra.mxu0 %v959
  %973 = vmatprep.subr.bf16.mxu0 0
  %974 = vmatpush1.bf16.msra.mxu0 %v960
  %975 = vmatprep.subr.bf16.mxu0 0
  %976 = vmatpush1.bf16.msra.mxu0 %v961
  %977 = vmatprep.subr.bf16.mxu0 0
  %978 = vmatpush1.bf16.msra.mxu0 %v962
  %979 = vmatprep.subr.bf16.mxu0 0
  %980 = vmatpush1.bf16.msra.mxu0 0
  %981 = vmatprep.subr.bf16.mxu0 0
  %982 = vmatpush1.bf16.msra.mxu0 0
  %983 = vmatprep.subr.bf16.mxu0 0
  %984 = vmatpush1.bf16.msra.mxu0 0
  %985 = vmatprep.subr.bf16.mxu0 0
  %986 = vmatpush1.bf16.msra.mxu0 0
  %987 = vmatprep.subr.bf16.mxu0 0
  %988 = vmatpush1.bf16.msra.mxu0 0
  %989 = vmatprep.subr.bf16.mxu0 0
  %990 = vmatpush1.bf16.msra.mxu0 0
  %991 = vmatprep.subr.bf16.mxu0 0
  %992 = vmatpush1.bf16.msra.mxu0 0
  %993 = vmatprep.subr.bf16.mxu0 0
  %994 = vmatpush1.bf16.msra.mxu0 0
  %995 = vmatprep.mubr.bf16.mxu0 0
  %996 = vmatmul.mubr.bf16.gmra.mrb[0].mxu0 %v909
  %v997 = vpop.f32.mrb[0].mxu0
  %v998 = vadd.f32 0.0, %v997
  %v999 = vpop.f32.mrb[0].mxu0
  %v1000 = vpop.f32.mrb[0].mxu0
  %v1001 = vadd.f32 0.0, %v1000
  %v1002 = vpop.f32.mrb[0].mxu0
  %1003 = vdwg.mxu0
  %1004 = vmatprep.subr.bf16.mxu0 0
  %1005 = vmatpush1.bf16.msra.mxu0 %v915
  %1006 = vmatprep.subr.bf16.mxu0 0
  %1007 = vmatpush1.bf16.msra.mxu0 %v916
  %1008 = vmatprep.subr.bf16.mxu0 0
  %1009 = vmatpush1.bf16.msra.mxu0 %v917
  %1010 = vmatprep.subr.bf16.mxu0 0
  %1011 = vmatpush1.bf16.msra.mxu0 %v918
  %1012 = vmatprep.subr.bf16.mxu0 0
  %1013 = vmatpush1.bf16.msra.mxu0 %v919
  %1014 = vmatprep.subr.bf16.mxu0 0
  %1015 = vmatpush1.bf16.msra.mxu0 %v920
  %1016 = vmatprep.subr.bf16.mxu0 0
  %1017 = vmatpush1.bf16.msra.mxu0 %v921
  %1018 = vmatprep.subr.bf16.mxu0 0
  %1019 = vmatpush1.bf16.msra.mxu0 %v922
  %1020 = vmatprep.subr.bf16.mxu0 0
  %1021 = vmatpush1.bf16.msra.mxu0 0
  %1022 = vmatprep.subr.bf16.mxu0 0
  %1023 = vmatpush1.bf16.msra.mxu0 0
  %1024 = vmatprep.subr.bf16.mxu0 0
  %1025 = vmatpush1.bf16.msra.mxu0 0
  %1026 = vmatprep.subr.bf16.mxu0 0
  %1027 = vmatpush1.bf16.msra.mxu0 0
  %1028 = vmatprep.subr.bf16.mxu0 0
  %1029 = vmatpush1.bf16.msra.mxu0 0
  %1030 = vmatprep.subr.bf16.mxu0 0
  %1031 = vmatpush1.bf16.msra.mxu0 0
  %1032 = vmatprep.subr.bf16.mxu0 0
  %1033 = vmatpush1.bf16.msra.mxu0 0
  %1034 = vmatprep.subr.bf16.mxu0 0
  %1035 = vmatpush1.bf16.msra.mxu0 0
  %1036 = vmatprep.mubr.bf16.mxu0 0
  %1037 = vmatmul.mubr.bf16.gmra.mrb[0].mxu0 %v909
  %v1038 = vpop.f32.mrb[0].mxu0
  %v1039 = vadd.f32 %v998, %v1038
  %v1040 = vpop.f32.mrb[0].mxu0
  %v1041 = vpop.f32.mrb[0].mxu0
  %v1042 = vadd.f32 %v1001, %v1041
  %v1043 = vpop.f32.mrb[0].mxu0
  %1044 = vdwg.mxu0
  %1045 = vmatprep.subr.bf16.mxu0 0
  %1046 = vmatpush1.bf16.msra.mxu0 %v915
  %1047 = vmatprep.subr.bf16.mxu0 0
  %1048 = vmatpush1.bf16.msra.mxu0 %v916
  %1049 = vmatprep.subr.bf16.mxu0 0
  %1050 = vmatpush1.bf16.msra.mxu0 %v917
  %1051 = vmatprep.subr.bf16.mxu0 0
  %1052 = vmatpush1.bf16.msra.mxu0 %v918
  %1053 = vmatprep.subr.bf16.mxu0 0
  %1054 = vmatpush1.bf16.msra.mxu0 %v919
  %1055 = vmatprep.subr.bf16.mxu0 0
  %1056 = vmatpush1.bf16.msra.mxu0 %v920
  %1057 = vmatprep.subr.bf16.mxu0 0
  %1058 = vmatpush1.bf16.msra.mxu0 %v921
  %1059 = vmatprep.subr.bf16.mxu0 0
  %1060 = vmatpush1.bf16.msra.mxu0 %v922
  %1061 = vmatprep.subr.bf16.mxu0 0
  %1062 = vmatpush1.bf16.msra.mxu0 0
  %1063 = vmatprep.subr.bf16.mxu0 0
  %1064 = vmatpush1.bf16.msra.mxu0 0
  %1065 = vmatprep.subr.bf16.mxu0 0
  %1066 = vmatpush1.bf16.msra.mxu0 0
  %1067 = vmatprep.subr.bf16.mxu0 0
  %1068 = vmatpush1.bf16.msra.mxu0 0
  %1069 = vmatprep.subr.bf16.mxu0 0
  %1070 = vmatpush1.bf16.msra.mxu0 0
  %1071 = vmatprep.subr.bf16.mxu0 0
  %1072 = vmatpush1.bf16.msra.mxu0 0
  %1073 = vmatprep.subr.bf16.mxu0 0
  %1074 = vmatpush1.bf16.msra.mxu0 0
  %1075 = vmatprep.subr.bf16.mxu0 0
  %1076 = vmatpush1.bf16.msra.mxu0 0
  %1077 = vmatprep.mubr.bf16.mxu0 0
  %1078 = vmatmul.mubr.bf16.gmra.mrb[0].mxu0 %v914
  %v1079 = vpop.f32.mrb[0].mxu0
  %v1080 = vadd.f32 0.0, %v1079
  %v1081 = vpop.f32.mrb[0].mxu0
  %v1082 = vpop.f32.mrb[0].mxu0
  %v1083 = vadd.f32 0.0, %v1082
  %v1084 = vpop.f32.mrb[0].mxu0
  %1085 = vdwg.mxu0
  %v1086 = vadd.f32 %v1039, %v1080
  %v1087 = vadd.f32 %v1042, %v1083
  %v1088 = vrot.slane %v891, 7
  %v1089 = vrot.slane %v892, 7
  %v1090 = vsel %vm262, %v1088, %v1089
  %v1091 = vsel %vm262, %v1089, %v1088
  %v1092 = vsel %vm37, %v1091, 0.0
  %v1093 = vsel %vm38, %v1090, 0.0
  %s1094 = scalar_lea.vmem %s2, 128
  %v1095 = vld [vmem:[%s1094] sm:$0xff]
  %v1096 = vld [vmem:[%s1094 + $0x8] sm:$0xff]
  %v1097 = vld [vmem:[%s1094 + $0x10] sm:$0xff]
  %v1098 = vld [vmem:[%s1094 + $0x18] sm:$0xff]
  %v1099 = vld [vmem:[%s1094 + $0x20] sm:$0xff]
  %v1100 = vld [vmem:[%s1094 + $0x28] sm:$0xff]
  %v1101 = vld [vmem:[%s1094 + $0x30] sm:$0xff]
  %v1102 = vld [vmem:[%s1094 + $0x38] sm:$0xff]
  %v1103 = vld [vmem:[%s1094 + $0x40] sm:$0xff]
  %v1104 = vld [vmem:[%s1094 + $0x48] sm:$0xff]
  %v1105 = vld [vmem:[%s1094 + $0x50] sm:$0xff]
  %v1106 = vld [vmem:[%s1094 + $0x58] sm:$0xff]
  %v1107 = vld [vmem:[%s1094 + $0x60] sm:$0xff]
  %v1108 = vld [vmem:[%s1094 + $0x68] sm:$0xff]
  %v1109 = vld [vmem:[%s1094 + $0x70] sm:$0xff]
  %v1110 = vld [vmem:[%s1094 + $0x78] sm:$0xff]
  %v1111 = vpack.c.bf16 %v1093, %v1092
  %v1112 = vunpack.c.l.bf16 %v1111
  %v1113 = vunpack.c.h.bf16 %v1111
  %v1114 = vsub.f32 %v1092, %v1112
  %v1115 = vsub.f32 %v1093, %v1113
  %v1116 = vpack.c.bf16 %v1115, %v1114
  %v1117 = vpack.c.bf16 %v1096, %v1095
  %v1118 = vpack.c.bf16 %v1098, %v1097
  %v1119 = vpack.c.bf16 %v1100, %v1099
  %v1120 = vpack.c.bf16 %v1102, %v1101
  %v1121 = vpack.c.bf16 %v1104, %v1103
  %v1122 = vpack.c.bf16 %v1106, %v1105
  %v1123 = vpack.c.bf16 %v1108, %v1107
  %v1124 = vpack.c.bf16 %v1110, %v1109
  %v1125 = vunpack.c.l.bf16 %v1117
  %v1126 = vunpack.c.h.bf16 %v1117
  %v1127 = vunpack.c.l.bf16 %v1118
  %v1128 = vunpack.c.h.bf16 %v1118
  %v1129 = vunpack.c.l.bf16 %v1119
  %v1130 = vunpack.c.h.bf16 %v1119
  %v1131 = vunpack.c.l.bf16 %v1120
  %v1132 = vunpack.c.h.bf16 %v1120
  %v1133 = vunpack.c.l.bf16 %v1121
  %v1134 = vunpack.c.h.bf16 %v1121
  %v1135 = vunpack.c.l.bf16 %v1122
  %v1136 = vunpack.c.h.bf16 %v1122
  %v1137 = vunpack.c.l.bf16 %v1123
  %v1138 = vunpack.c.h.bf16 %v1123
  %v1139 = vunpack.c.l.bf16 %v1124
  %v1140 = vunpack.c.h.bf16 %v1124
  %v1141 = vsub.f32 %v1095, %v1125
  %v1142 = vsub.f32 %v1096, %v1126
  %v1143 = vsub.f32 %v1097, %v1127
  %v1144 = vsub.f32 %v1098, %v1128
  %v1145 = vsub.f32 %v1099, %v1129
  %v1146 = vsub.f32 %v1100, %v1130
  %v1147 = vsub.f32 %v1101, %v1131
  %v1148 = vsub.f32 %v1102, %v1132
  %v1149 = vsub.f32 %v1103, %v1133
  %v1150 = vsub.f32 %v1104, %v1134
  %v1151 = vsub.f32 %v1105, %v1135
  %v1152 = vsub.f32 %v1106, %v1136
  %v1153 = vsub.f32 %v1107, %v1137
  %v1154 = vsub.f32 %v1108, %v1138
  %v1155 = vsub.f32 %v1109, %v1139
  %v1156 = vsub.f32 %v1110, %v1140
  %v1157 = vpack.c.bf16 %v1142, %v1141
  %v1158 = vpack.c.bf16 %v1144, %v1143
  %v1159 = vpack.c.bf16 %v1146, %v1145
  %v1160 = vpack.c.bf16 %v1148, %v1147
  %v1161 = vpack.c.bf16 %v1150, %v1149
  %v1162 = vpack.c.bf16 %v1152, %v1151
  %v1163 = vpack.c.bf16 %v1154, %v1153
  %v1164 = vpack.c.bf16 %v1156, %v1155
  %1165 = vmatprep.subr.bf16.mxu0 0
  %1166 = vmatpush1.bf16.msra.mxu0 %v1157
  %1167 = vmatprep.subr.bf16.mxu0 0
  %1168 = vmatpush1.bf16.msra.mxu0 %v1158
  %1169 = vmatprep.subr.bf16.mxu0 0
  %1170 = vmatpush1.bf16.msra.mxu0 %v1159
  %1171 = vmatprep.subr.bf16.mxu0 0
  %1172 = vmatpush1.bf16.msra.mxu0 %v1160
  %1173 = vmatprep.subr.bf16.mxu0 0
  %1174 = vmatpush1.bf16.msra.mxu0 %v1161
  %1175 = vmatprep.subr.bf16.mxu0 0
  %1176 = vmatpush1.bf16.msra.mxu0 %v1162
  %1177 = vmatprep.subr.bf16.mxu0 0
  %1178 = vmatpush1.bf16.msra.mxu0 %v1163
  %1179 = vmatprep.subr.bf16.mxu0 0
  %1180 = vmatpush1.bf16.msra.mxu0 %v1164
  %1181 = vmatprep.subr.bf16.mxu0 0
  %1182 = vmatpush1.bf16.msra.mxu0 0
  %1183 = vmatprep.subr.bf16.mxu0 0
  %1184 = vmatpush1.bf16.msra.mxu0 0
  %1185 = vmatprep.subr.bf16.mxu0 0
  %1186 = vmatpush1.bf16.msra.mxu0 0
  %1187 = vmatprep.subr.bf16.mxu0 0
  %1188 = vmatpush1.bf16.msra.mxu0 0
  %1189 = vmatprep.subr.bf16.mxu0 0
  %1190 = vmatpush1.bf16.msra.mxu0 0
  %1191 = vmatprep.subr.bf16.mxu0 0
  %1192 = vmatpush1.bf16.msra.mxu0 0
  %1193 = vmatprep.subr.bf16.mxu0 0
  %1194 = vmatpush1.bf16.msra.mxu0 0
  %1195 = vmatprep.subr.bf16.mxu0 0
  %1196 = vmatpush1.bf16.msra.mxu0 0
  %1197 = vmatprep.mubr.bf16.mxu0 0
  %1198 = vmatmul.mubr.bf16.gmra.mrb[0].mxu0 %v1111
  %v1199 = vpop.f32.mrb[0].mxu0
  %v1200 = vadd.f32 0.0, %v1199
  %v1201 = vpop.f32.mrb[0].mxu0
  %v1202 = vpop.f32.mrb[0].mxu0
  %v1203 = vadd.f32 0.0, %v1202
  %v1204 = vpop.f32.mrb[0].mxu0
  %1205 = vdwg.mxu0
  %1206 = vmatprep.subr.bf16.mxu0 0
  %1207 = vmatpush1.bf16.msra.mxu0 %v1117
  %1208 = vmatprep.subr.bf16.mxu0 0
  %1209 = vmatpush1.bf16.msra.mxu0 %v1118
  %1210 = vmatprep.subr.bf16.mxu0 0
  %1211 = vmatpush1.bf16.msra.mxu0 %v1119
  %1212 = vmatprep.subr.bf16.mxu0 0
  %1213 = vmatpush1.bf16.msra.mxu0 %v1120
  %1214 = vmatprep.subr.bf16.mxu0 0
  %1215 = vmatpush1.bf16.msra.mxu0 %v1121
  %1216 = vmatprep.subr.bf16.mxu0 0
  %1217 = vmatpush1.bf16.msra.mxu0 %v1122
  %1218 = vmatprep.subr.bf16.mxu0 0
  %1219 = vmatpush1.bf16.msra.mxu0 %v1123
  %1220 = vmatprep.subr.bf16.mxu0 0
  %1221 = vmatpush1.bf16.msra.mxu0 %v1124
  %1222 = vmatprep.subr.bf16.mxu0 0
  %1223 = vmatpush1.bf16.msra.mxu0 0
  %1224 = vmatprep.subr.bf16.mxu0 0
  %1225 = vmatpush1.bf16.msra.mxu0 0
  %1226 = vmatprep.subr.bf16.mxu0 0
  %1227 = vmatpush1.bf16.msra.mxu0 0
  %1228 = vmatprep.subr.bf16.mxu0 0
  %1229 = vmatpush1.bf16.msra.mxu0 0
  %1230 = vmatprep.subr.bf16.mxu0 0
  %1231 = vmatpush1.bf16.msra.mxu0 0
  %1232 = vmatprep.subr.bf16.mxu0 0
  %1233 = vmatpush1.bf16.msra.mxu0 0
  %1234 = vmatprep.subr.bf16.mxu0 0
  %1235 = vmatpush1.bf16.msra.mxu0 0
  %1236 = vmatprep.subr.bf16.mxu0 0
  %1237 = vmatpush1.bf16.msra.mxu0 0
  %1238 = vmatprep.mubr.bf16.mxu0 0
  %1239 = vmatmul.mubr.bf16.gmra.mrb[0].mxu0 %v1111
  %v1240 = vpop.f32.mrb[0].mxu0
  %v1241 = vadd.f32 %v1200, %v1240
  %v1242 = vpop.f32.mrb[0].mxu0
  %v1243 = vpop.f32.mrb[0].mxu0
  %v1244 = vadd.f32 %v1203, %v1243
  %v1245 = vpop.f32.mrb[0].mxu0
  %1246 = vdwg.mxu0
  %1247 = vmatprep.subr.bf16.mxu0 0
  %1248 = vmatpush1.bf16.msra.mxu0 %v1117
  %1249 = vmatprep.subr.bf16.mxu0 0
  %1250 = vmatpush1.bf16.msra.mxu0 %v1118
  %1251 = vmatprep.subr.bf16.mxu0 0
  %1252 = vmatpush1.bf16.msra.mxu0 %v1119
  %1253 = vmatprep.subr.bf16.mxu0 0
  %1254 = vmatpush1.bf16.msra.mxu0 %v1120
  %1255 = vmatprep.subr.bf16.mxu0 0
  %1256 = vmatpush1.bf16.msra.mxu0 %v1121
  %1257 = vmatprep.subr.bf16.mxu0 0
  %1258 = vmatpush1.bf16.msra.mxu0 %v1122
  %1259 = vmatprep.subr.bf16.mxu0 0
  %1260 = vmatpush1.bf16.msra.mxu0 %v1123
  %1261 = vmatprep.subr.bf16.mxu0 0
  %1262 = vmatpush1.bf16.msra.mxu0 %v1124
  %1263 = vmatprep.subr.bf16.mxu0 0
  %1264 = vmatpush1.bf16.msra.mxu0 0
  %1265 = vmatprep.subr.bf16.mxu0 0
  %1266 = vmatpush1.bf16.msra.mxu0 0
  %1267 = vmatprep.subr.bf16.mxu0 0
  %1268 = vmatpush1.bf16.msra.mxu0 0
  %1269 = vmatprep.subr.bf16.mxu0 0
  %1270 = vmatpush1.bf16.msra.mxu0 0
  %1271 = vmatprep.subr.bf16.mxu0 0
  %1272 = vmatpush1.bf16.msra.mxu0 0
  %1273 = vmatprep.subr.bf16.mxu0 0
  %1274 = vmatpush1.bf16.msra.mxu0 0
  %1275 = vmatprep.subr.bf16.mxu0 0
  %1276 = vmatpush1.bf16.msra.mxu0 0
  %1277 = vmatprep.subr.bf16.mxu0 0
  %1278 = vmatpush1.bf16.msra.mxu0 0
  %1279 = vmatprep.mubr.bf16.mxu0 0
  %1280 = vmatmul.mubr.bf16.gmra.mrb[0].mxu0 %v1116
  %v1281 = vpop.f32.mrb[0].mxu0
  %v1282 = vadd.f32 0.0, %v1281
  %v1283 = vpop.f32.mrb[0].mxu0
  %v1284 = vpop.f32.mrb[0].mxu0
  %v1285 = vadd.f32 0.0, %v1284
  %v1286 = vpop.f32.mrb[0].mxu0
  %1287 = vdwg.mxu0
  %v1288 = vadd.f32 %v1241, %v1282
  %v1289 = vadd.f32 %v1244, %v1285
  %v1290 = vadd.f32 %v1086, %v1288
  %v1291 = vadd.f32 %v1087, %v1289
  %v1292 = vrot.slane %v891, 1
  %v1293 = vrot.slane %v892, 1
  %v1294 = vsel %vm467, %v1292, %v1293
  %v1295 = vsel %vm467, %v1293, %v1292
  %v1296 = vsel %vm39, %v1294, 0.0
  %v1297 = vsel %vm40, %v1295, 0.0
  %s1298 = scalar_lea.vmem %s2, 256
  %v1299 = vld [vmem:[%s1298] sm:$0xff]
  %v1300 = vld [vmem:[%s1298 + $0x8] sm:$0xff]
  %v1301 = vld [vmem:[%s1298 + $0x10] sm:$0xff]
  %v1302 = vld [vmem:[%s1298 + $0x18] sm:$0xff]
  %v1303 = vld [vmem:[%s1298 + $0x20] sm:$0xff]
  %v1304 = vld [vmem:[%s1298 + $0x28] sm:$0xff]
  %v1305 = vld [vmem:[%s1298 + $0x30] sm:$0xff]
  %v1306 = vld [vmem:[%s1298 + $0x38] sm:$0xff]
  %v1307 = vld [vmem:[%s1298 + $0x40] sm:$0xff]
  %v1308 = vld [vmem:[%s1298 + $0x48] sm:$0xff]
  %v1309 = vld [vmem:[%s1298 + $0x50] sm:$0xff]
  %v1310 = vld [vmem:[%s1298 + $0x58] sm:$0xff]
  %v1311 = vld [vmem:[%s1298 + $0x60] sm:$0xff]
  %v1312 = vld [vmem:[%s1298 + $0x68] sm:$0xff]
  %v1313 = vld [vmem:[%s1298 + $0x70] sm:$0xff]
  %v1314 = vld [vmem:[%s1298 + $0x78] sm:$0xff]
  %v1315 = vpack.c.bf16 %v1297, %v1296
  %v1316 = vunpack.c.l.bf16 %v1315
  %v1317 = vunpack.c.h.bf16 %v1315
  %v1318 = vsub.f32 %v1296, %v1316
  %v1319 = vsub.f32 %v1297, %v1317
  %v1320 = vpack.c.bf16 %v1319, %v1318
  %v1321 = vpack.c.bf16 %v1300, %v1299
  %v1322 = vpack.c.bf16 %v1302, %v1301
  %v1323 = vpack.c.bf16 %v1304, %v1303
  %v1324 = vpack.c.bf16 %v1306, %v1305
  %v1325 = vpack.c.bf16 %v1308, %v1307
  %v1326 = vpack.c.bf16 %v1310, %v1309
  %v1327 = vpack.c.bf16 %v1312, %v1311
  %v1328 = vpack.c.bf16 %v1314, %v1313
  %v1329 = vunpack.c.l.bf16 %v1321
  %v1330 = vunpack.c.h.bf16 %v1321
  %v1331 = vunpack.c.l.bf16 %v1322
  %v1332 = vunpack.c.h.bf16 %v1322
  %v1333 = vunpack.c.l.bf16 %v1323
  %v1334 = vunpack.c.h.bf16 %v1323
  %v1335 = vunpack.c.l.bf16 %v1324
  %v1336 = vunpack.c.h.bf16 %v1324
  %v1337 = vunpack.c.l.bf16 %v1325
  %v1338 = vunpack.c.h.bf16 %v1325
  %v1339 = vunpack.c.l.bf16 %v1326
  %v1340 = vunpack.c.h.bf16 %v1326
  %v1341 = vunpack.c.l.bf16 %v1327
  %v1342 = vunpack.c.h.bf16 %v1327
  %v1343 = vunpack.c.l.bf16 %v1328
  %v1344 = vunpack.c.h.bf16 %v1328
  %v1345 = vsub.f32 %v1299, %v1329
  %v1346 = vsub.f32 %v1300, %v1330
  %v1347 = vsub.f32 %v1301, %v1331
  %v1348 = vsub.f32 %v1302, %v1332
  %v1349 = vsub.f32 %v1303, %v1333
  %v1350 = vsub.f32 %v1304, %v1334
  %v1351 = vsub.f32 %v1305, %v1335
  %v1352 = vsub.f32 %v1306, %v1336
  %v1353 = vsub.f32 %v1307, %v1337
  %v1354 = vsub.f32 %v1308, %v1338
  %v1355 = vsub.f32 %v1309, %v1339
  %v1356 = vsub.f32 %v1310, %v1340
  %v1357 = vsub.f32 %v1311, %v1341
  %v1358 = vsub.f32 %v1312, %v1342
  %v1359 = vsub.f32 %v1313, %v1343
  %v1360 = vsub.f32 %v1314, %v1344
  %v1361 = vpack.c.bf16 %v1346, %v1345
  %v1362 = vpack.c.bf16 %v1348, %v1347
  %v1363 = vpack.c.bf16 %v1350, %v1349
  %v1364 = vpack.c.bf16 %v1352, %v1351
  %v1365 = vpack.c.bf16 %v1354, %v1353
  %v1366 = vpack.c.bf16 %v1356, %v1355
  %v1367 = vpack.c.bf16 %v1358, %v1357
  %v1368 = vpack.c.bf16 %v1360, %v1359
  %1369 = vmatprep.subr.bf16.mxu0 0
  %1370 = vmatpush1.bf16.msra.mxu0 %v1361
  %1371 = vmatprep.subr.bf16.mxu0 0
  %1372 = vmatpush1.bf16.msra.mxu0 %v1362
  %1373 = vmatprep.subr.bf16.mxu0 0
  %1374 = vmatpush1.bf16.msra.mxu0 %v1363
  %1375 = vmatprep.subr.bf16.mxu0 0
  %1376 = vmatpush1.bf16.msra.mxu0 %v1364
  %1377 = vmatprep.subr.bf16.mxu0 0
  %1378 = vmatpush1.bf16.msra.mxu0 %v1365
  %1379 = vmatprep.subr.bf16.mxu0 0
  %1380 = vmatpush1.bf16.msra.mxu0 %v1366
  %1381 = vmatprep.subr.bf16.mxu0 0
  %1382 = vmatpush1.bf16.msra.mxu0 %v1367
  %1383 = vmatprep.subr.bf16.mxu0 0
  %1384 = vmatpush1.bf16.msra.mxu0 %v1368
  %1385 = vmatprep.subr.bf16.mxu0 0
  %1386 = vmatpush1.bf16.msra.mxu0 0
  %1387 = vmatprep.subr.bf16.mxu0 0
  %1388 = vmatpush1.bf16.msra.mxu0 0
  %1389 = vmatprep.subr.bf16.mxu0 0
  %1390 = vmatpush1.bf16.msra.mxu0 0
  %1391 = vmatprep.subr.bf16.mxu0 0
  %1392 = vmatpush1.bf16.msra.mxu0 0
  %1393 = vmatprep.subr.bf16.mxu0 0
  %1394 = vmatpush1.bf16.msra.mxu0 0
  %1395 = vmatprep.subr.bf16.mxu0 0
  %1396 = vmatpush1.bf16.msra.mxu0 0
  %1397 = vmatprep.subr.bf16.mxu0 0
  %1398 = vmatpush1.bf16.msra.mxu0 0
  %1399 = vmatprep.subr.bf16.mxu0 0
  %1400 = vmatpush1.bf16.msra.mxu0 0
  %1401 = vmatprep.mubr.bf16.mxu0 0
  %1402 = vmatmul.mubr.bf16.gmra.mrb[0].mxu0 %v1315
  %v1403 = vpop.f32.mrb[0].mxu0
  %v1404 = vadd.f32 0.0, %v1403
  %v1405 = vpop.f32.mrb[0].mxu0
  %v1406 = vpop.f32.mrb[0].mxu0
  %v1407 = vadd.f32 0.0, %v1406
  %v1408 = vpop.f32.mrb[0].mxu0
  %1409 = vdwg.mxu0
  %1410 = vmatprep.subr.bf16.mxu0 0
  %1411 = vmatpush1.bf16.msra.mxu0 %v1321
  %1412 = vmatprep.subr.bf16.mxu0 0
  %1413 = vmatpush1.bf16.msra.mxu0 %v1322
  %1414 = vmatprep.subr.bf16.mxu0 0
  %1415 = vmatpush1.bf16.msra.mxu0 %v1323
  %1416 = vmatprep.subr.bf16.mxu0 0
  %1417 = vmatpush1.bf16.msra.mxu0 %v1324
  %1418 = vmatprep.subr.bf16.mxu0 0
  %1419 = vmatpush1.bf16.msra.mxu0 %v1325
  %1420 = vmatprep.subr.bf16.mxu0 0
  %1421 = vmatpush1.bf16.msra.mxu0 %v1326
  %1422 = vmatprep.subr.bf16.mxu0 0
  %1423 = vmatpush1.bf16.msra.mxu0 %v1327
  %1424 = vmatprep.subr.bf16.mxu0 0
  %1425 = vmatpush1.bf16.msra.mxu0 %v1328
  %1426 = vmatprep.subr.bf16.mxu0 0
  %1427 = vmatpush1.bf16.msra.mxu0 0
  %1428 = vmatprep.subr.bf16.mxu0 0
  %1429 = vmatpush1.bf16.msra.mxu0 0
  %1430 = vmatprep.subr.bf16.mxu0 0
  %1431 = vmatpush1.bf16.msra.mxu0 0
  %1432 = vmatprep.subr.bf16.mxu0 0
  %1433 = vmatpush1.bf16.msra.mxu0 0
  %1434 = vmatprep.subr.bf16.mxu0 0
  %1435 = vmatpush1.bf16.msra.mxu0 0
  %1436 = vmatprep.subr.bf16.mxu0 0
  %1437 = vmatpush1.bf16.msra.mxu0 0
  %1438 = vmatprep.subr.bf16.mxu0 0
  %1439 = vmatpush1.bf16.msra.mxu0 0
  %1440 = vmatprep.subr.bf16.mxu0 0
  %1441 = vmatpush1.bf16.msra.mxu0 0
  %1442 = vmatprep.mubr.bf16.mxu0 0
  %1443 = vmatmul.mubr.bf16.gmra.mrb[0].mxu0 %v1315
  %v1444 = vpop.f32.mrb[0].mxu0
  %v1445 = vadd.f32 %v1404, %v1444
  %v1446 = vpop.f32.mrb[0].mxu0
  %v1447 = vpop.f32.mrb[0].mxu0
  %v1448 = vadd.f32 %v1407, %v1447
  %v1449 = vpop.f32.mrb[0].mxu0
  %1450 = vdwg.mxu0
  %1451 = vmatprep.subr.bf16.mxu0 0
  %1452 = vmatpush1.bf16.msra.mxu0 %v1321
  %1453 = vmatprep.subr.bf16.mxu0 0
  %1454 = vmatpush1.bf16.msra.mxu0 %v1322
  %1455 = vmatprep.subr.bf16.mxu0 0
  %1456 = vmatpush1.bf16.msra.mxu0 %v1323
  %1457 = vmatprep.subr.bf16.mxu0 0
  %1458 = vmatpush1.bf16.msra.mxu0 %v1324
  %1459 = vmatprep.subr.bf16.mxu0 0
  %1460 = vmatpush1.bf16.msra.mxu0 %v1325
  %1461 = vmatprep.subr.bf16.mxu0 0
  %1462 = vmatpush1.bf16.msra.mxu0 %v1326
  %1463 = vmatprep.subr.bf16.mxu0 0
  %1464 = vmatpush1.bf16.msra.mxu0 %v1327
  %1465 = vmatprep.subr.bf16.mxu0 0
  %1466 = vmatpush1.bf16.msra.mxu0 %v1328
  %1467 = vmatprep.subr.bf16.mxu0 0
  %1468 = vmatpush1.bf16.msra.mxu0 0
  %1469 = vmatprep.subr.bf16.mxu0 0
  %1470 = vmatpush1.bf16.msra.mxu0 0
  %1471 = vmatprep.subr.bf16.mxu0 0
  %1472 = vmatpush1.bf16.msra.mxu0 0
  %1473 = vmatprep.subr.bf16.mxu0 0
  %1474 = vmatpush1.bf16.msra.mxu0 0
  %1475 = vmatprep.subr.bf16.mxu0 0
  %1476 = vmatpush1.bf16.msra.mxu0 0
  %1477 = vmatprep.subr.bf16.mxu0 0
  %1478 = vmatpush1.bf16.msra.mxu0 0
  %1479 = vmatprep.subr.bf16.mxu0 0
  %1480 = vmatpush1.bf16.msra.mxu0 0
  %1481 = vmatprep.subr.bf16.mxu0 0
  %1482 = vmatpush1.bf16.msra.mxu0 0
  %1483 = vmatprep.mubr.bf16.mxu0 0
  %1484 = vmatmul.mubr.bf16.gmra.mrb[0].mxu0 %v1320
  %v1485 = vpop.f32.mrb[0].mxu0
  %v1486 = vadd.f32 0.0, %v1485
  %v1487 = vpop.f32.mrb[0].mxu0
  %v1488 = vpop.f32.mrb[0].mxu0
  %v1489 = vadd.f32 0.0, %v1488
  %v1490 = vpop.f32.mrb[0].mxu0
  %1491 = vdwg.mxu0
  %v1492 = vadd.f32 %v1445, %v1486
  %v1493 = vadd.f32 %v1448, %v1489
  %v1494 = vadd.f32 %v1290, %v1492
  %v1495 = vadd.f32 %v1291, %v1493
  %v1496 = vld [vmem:[%s6] sm:$0x1]
  %v1497 = vld [vmem:[%s7] sm:$0x1]
  %v1498 = vadd.f32 %v1494, %v1495
  %v1499 = vrot.slane %v1498, 4
  %v1500 = vadd.f32 %v1498, %v1499
  %v1501 = vrot.slane %v1500, 2
  %v1502 = vadd.f32 %v1500, %v1501
  %v1503 = vrot.slane %v1502, 1
  %v1504 = vadd.f32 %v1502, %v1503
  %v1505 = vpack.c.bf16 %v1504, %v1504
  %v1506 = vunpack.c.l.bf16 %v1505
  %v1507 = vsub.f32 %v1504, %v1506
  %v1508 = vpack.c.bf16 %v1507, %v1507
  %1509 = vmatprep.subr.bf16.mxu0 0
  %1510 = vmatpush1.bf16.msra.mxu0 %v57
  %1511 = vmatprep.subr.bf16.mxu0 0
  %1512 = vmatpush1.bf16.msra.mxu0 %v58
  %1513 = vmatprep.subr.bf16.mxu0 0
  %1514 = vmatpush1.bf16.msra.mxu0 %v59
  %1515 = vmatprep.subr.bf16.mxu0 0
  %1516 = vmatpush1.bf16.msra.mxu0 %v60
  %1517 = vmatprep.subr.bf16.mxu0 0
  %1518 = vmatpush1.bf16.msra.mxu0 %v61
  %1519 = vmatprep.subr.bf16.mxu0 0
  %1520 = vmatpush1.bf16.msra.mxu0 %v62
  %1521 = vmatprep.subr.bf16.mxu0 0
  %1522 = vmatpush1.bf16.msra.mxu0 %v63
  %1523 = vmatprep.subr.bf16.mxu0 0
  %1524 = vmatpush1.bf16.msra.mxu0 %v64
  %1525 = vmatprep.subr.bf16.mxu0 0
  %1526 = vmatpush1.bf16.msra.mxu0 0
  %1527 = vmatprep.subr.bf16.mxu0 0
  %1528 = vmatpush1.bf16.msra.mxu0 0
  %1529 = vmatprep.subr.bf16.mxu0 0
  %1530 = vmatpush1.bf16.msra.mxu0 0
  %1531 = vmatprep.subr.bf16.mxu0 0
  %1532 = vmatpush1.bf16.msra.mxu0 0
  %1533 = vmatprep.subr.bf16.mxu0 0
  %1534 = vmatpush1.bf16.msra.mxu0 0
  %1535 = vmatprep.subr.bf16.mxu0 0
  %1536 = vmatpush1.bf16.msra.mxu0 0
  %1537 = vmatprep.subr.bf16.mxu0 0
  %1538 = vmatpush1.bf16.msra.mxu0 0
  %1539 = vmatprep.subr.bf16.mxu0 0
  %1540 = vmatpush1.bf16.msra.mxu0 0
  %1541 = vmatprep.mubr.bf16.mxu0 0
  %1542 = vmatmul.mubr.bf16.gmra.mrb[0].mxu0 %v1508
  %v1543 = vpop.f32.mrb[0].mxu0
  %v1544 = vadd.f32 0.0, %v1543
  %v1545 = vpop.f32.mrb[0].mxu0
  %v1546 = vpop.f32.mrb[0].mxu0
  %v1547 = vpop.f32.mrb[0].mxu0
  %1548 = vdwg.mxu0
  %1549 = vmatprep.subr.bf16.mxu0 0
  %1550 = vmatpush1.bf16.msra.mxu0 %v57
  %1551 = vmatprep.subr.bf16.mxu0 0
  %1552 = vmatpush1.bf16.msra.mxu0 %v58
  %1553 = vmatprep.subr.bf16.mxu0 0
  %1554 = vmatpush1.bf16.msra.mxu0 %v59
  %1555 = vmatprep.subr.bf16.mxu0 0
  %1556 = vmatpush1.bf16.msra.mxu0 %v60
  %1557 = vmatprep.subr.bf16.mxu0 0
  %1558 = vmatpush1.bf16.msra.mxu0 %v61
  %1559 = vmatprep.subr.bf16.mxu0 0
  %1560 = vmatpush1.bf16.msra.mxu0 %v62
  %1561 = vmatprep.subr.bf16.mxu0 0
  %1562 = vmatpush1.bf16.msra.mxu0 %v63
  %1563 = vmatprep.subr.bf16.mxu0 0
  %1564 = vmatpush1.bf16.msra.mxu0 %v64
  %1565 = vmatprep.subr.bf16.mxu0 0
  %1566 = vmatpush1.bf16.msra.mxu0 0
  %1567 = vmatprep.subr.bf16.mxu0 0
  %1568 = vmatpush1.bf16.msra.mxu0 0
  %1569 = vmatprep.subr.bf16.mxu0 0
  %1570 = vmatpush1.bf16.msra.mxu0 0
  %1571 = vmatprep.subr.bf16.mxu0 0
  %1572 = vmatpush1.bf16.msra.mxu0 0
  %1573 = vmatprep.subr.bf16.mxu0 0
  %1574 = vmatpush1.bf16.msra.mxu0 0
  %1575 = vmatprep.subr.bf16.mxu0 0
  %1576 = vmatpush1.bf16.msra.mxu0 0
  %1577 = vmatprep.subr.bf16.mxu0 0
  %1578 = vmatpush1.bf16.msra.mxu0 0
  %1579 = vmatprep.subr.bf16.mxu0 0
  %1580 = vmatpush1.bf16.msra.mxu0 0
  %1581 = vmatprep.mubr.bf16.mxu0 0
  %1582 = vmatmul.mubr.bf16.gmra.mrb[0].mxu0 %v1505
  %v1583 = vpop.f32.mrb[0].mxu0
  %v1584 = vadd.f32 %v1544, %v1583
  %v1585 = vpop.f32.mrb[0].mxu0
  %v1586 = vpop.f32.mrb[0].mxu0
  %v1587 = vpop.f32.mrb[0].mxu0
  %1588 = vdwg.mxu0
  %v1589 = vmul.f32 %v1584, 0.001953125
  %v1590 = vmul.f32 %v1494, %v1494
  %v1591 = vmul.f32 %v1495, %v1495
  %v1592 = vadd.f32 %v1590, %v1591
  %v1593 = vrot.slane %v1592, 4
  %v1594 = vadd.f32 %v1592, %v1593
  %v1595 = vrot.slane %v1594, 2
  %v1596 = vadd.f32 %v1594, %v1595
  %v1597 = vrot.slane %v1596, 1
  %v1598 = vadd.f32 %v1596, %v1597
  %v1599 = vpack.c.bf16 %v1598, %v1598
  %v1600 = vunpack.c.l.bf16 %v1599
  %v1601 = vsub.f32 %v1598, %v1600
  %v1602 = vpack.c.bf16 %v1601, %v1601
  %1603 = vmatprep.subr.bf16.mxu0 0
  %1604 = vmatpush1.bf16.msra.mxu0 %v57
  %1605 = vmatprep.subr.bf16.mxu0 0
  %1606 = vmatpush1.bf16.msra.mxu0 %v58
  %1607 = vmatprep.subr.bf16.mxu0 0
  %1608 = vmatpush1.bf16.msra.mxu0 %v59
  %1609 = vmatprep.subr.bf16.mxu0 0
  %1610 = vmatpush1.bf16.msra.mxu0 %v60
  %1611 = vmatprep.subr.bf16.mxu0 0
  %1612 = vmatpush1.bf16.msra.mxu0 %v61
  %1613 = vmatprep.subr.bf16.mxu0 0
  %1614 = vmatpush1.bf16.msra.mxu0 %v62
  %1615 = vmatprep.subr.bf16.mxu0 0
  %1616 = vmatpush1.bf16.msra.mxu0 %v63
  %1617 = vmatprep.subr.bf16.mxu0 0
  %1618 = vmatpush1.bf16.msra.mxu0 %v64
  %1619 = vmatprep.subr.bf16.mxu0 0
  %1620 = vmatpush1.bf16.msra.mxu0 0
  %1621 = vmatprep.subr.bf16.mxu0 0
  %1622 = vmatpush1.bf16.msra.mxu0 0
  %1623 = vmatprep.subr.bf16.mxu0 0
  %1624 = vmatpush1.bf16.msra.mxu0 0
  %1625 = vmatprep.subr.bf16.mxu0 0
  %1626 = vmatpush1.bf16.msra.mxu0 0
  %1627 = vmatprep.subr.bf16.mxu0 0
  %1628 = vmatpush1.bf16.msra.mxu0 0
  %1629 = vmatprep.subr.bf16.mxu0 0
  %1630 = vmatpush1.bf16.msra.mxu0 0
  %1631 = vmatprep.subr.bf16.mxu0 0
  %1632 = vmatpush1.bf16.msra.mxu0 0
  %1633 = vmatprep.subr.bf16.mxu0 0
  %1634 = vmatpush1.bf16.msra.mxu0 0
  %1635 = vmatprep.mubr.bf16.mxu0 0
  %1636 = vmatmul.mubr.bf16.gmra.mrb[0].mxu0 %v1602
  %v1637 = vpop.f32.mrb[0].mxu0
  %v1638 = vadd.f32 0.0, %v1637
  %v1639 = vpop.f32.mrb[0].mxu0
  %v1640 = vpop.f32.mrb[0].mxu0
  %v1641 = vpop.f32.mrb[0].mxu0
  %1642 = vdwg.mxu0
  %1643 = vmatprep.subr.bf16.mxu0 0
  %1644 = vmatpush1.bf16.msra.mxu0 %v57
  %1645 = vmatprep.subr.bf16.mxu0 0
  %1646 = vmatpush1.bf16.msra.mxu0 %v58
  %1647 = vmatprep.subr.bf16.mxu0 0
  %1648 = vmatpush1.bf16.msra.mxu0 %v59
  %1649 = vmatprep.subr.bf16.mxu0 0
  %1650 = vmatpush1.bf16.msra.mxu0 %v60
  %1651 = vmatprep.subr.bf16.mxu0 0
  %1652 = vmatpush1.bf16.msra.mxu0 %v61
  %1653 = vmatprep.subr.bf16.mxu0 0
  %1654 = vmatpush1.bf16.msra.mxu0 %v62
  %1655 = vmatprep.subr.bf16.mxu0 0
  %1656 = vmatpush1.bf16.msra.mxu0 %v63
  %1657 = vmatprep.subr.bf16.mxu0 0
  %1658 = vmatpush1.bf16.msra.mxu0 %v64
  %1659 = vmatprep.subr.bf16.mxu0 0
  %1660 = vmatpush1.bf16.msra.mxu0 0
  %1661 = vmatprep.subr.bf16.mxu0 0
  %1662 = vmatpush1.bf16.msra.mxu0 0
  %1663 = vmatprep.subr.bf16.mxu0 0
  %1664 = vmatpush1.bf16.msra.mxu0 0
  %1665 = vmatprep.subr.bf16.mxu0 0
  %1666 = vmatpush1.bf16.msra.mxu0 0
  %1667 = vmatprep.subr.bf16.mxu0 0
  %1668 = vmatpush1.bf16.msra.mxu0 0
  %1669 = vmatprep.subr.bf16.mxu0 0
  %1670 = vmatpush1.bf16.msra.mxu0 0
  %1671 = vmatprep.subr.bf16.mxu0 0
  %1672 = vmatpush1.bf16.msra.mxu0 0
  %1673 = vmatprep.subr.bf16.mxu0 0
  %1674 = vmatpush1.bf16.msra.mxu0 0
  %1675 = vmatprep.mubr.bf16.mxu0 0
  %1676 = vmatmul.mubr.bf16.gmra.mrb[0].mxu0 %v1599
  %v1677 = vpop.f32.mrb[0].mxu0
  %v1678 = vadd.f32 %v1638, %v1677
  %v1679 = vpop.f32.mrb[0].mxu0
  %v1680 = vpop.f32.mrb[0].mxu0
  %v1681 = vpop.f32.mrb[0].mxu0
  %1682 = vdwg.mxu0
  %v1683 = vmul.f32 %v1678, 0.001953125
  %v1684 = vmul.f32 %v1589, %v1589
  %v1685 = vsub.f32 %v1683, %v1684
  %v1686 = vmax.f32 %v1685, 0.0
  %v1687 = vlaneseq
  %v1688 = vshrl.u32 %v1687, 7
  %v1689 = vsub.s32 0, %v1688
  %v1690 = vrot.slane %v1589, %v1689
  %v1691 = vsub.f32 %v1494, %v1690
  %v1692 = vsub.f32 %v1495, %v1690
  %v1693 = vadd.f32 %v1686, 1e-05
  %v1694 = vrsqrt.pop %v1693
  %v1695 = vlaneseq
  %v1696 = vshrl.u32 %v1695, 7
  %v1697 = vsub.s32 0, %v1696
  %v1698 = vrot.slane %v1694, %v1697
  %v1699 = vmul.f32 %v1691, %v1698
  %v1700 = vmul.f32 %v1692, %v1698
  %v1702 = vlaneseq
  %v1703 = vshrl.u32 %v1702, 7
  %v1704 = vsub.s32 0, %v1703
  %v1705 = vrot.slane %v1496, %v1704
  %v1707 = vmul.f32 %v1699, %v1705
  %v1708 = vmul.f32 %v1700, %v1705
  %v1710 = vlaneseq
  %v1711 = vshrl.u32 %v1710, 7
  %v1712 = vsub.s32 0, %v1711
  %v1713 = vrot.slane %v1497, %v1712
  %v1715 = vadd.f32 %v1707, %v1713
  %v1716 = vadd.f32 %v1708, %v1713
  %v1717 = vadd.f32 %v1715, %v30
  %v1718 = vadd.f32 %v1716, %v31
  %v1719 = vmax.f32 %v1717, 0.0
  %v1720 = vmax.f32 %v1718, 0.0
  %1721 = vst [vmem:[%s8] sm:$0xff] %v1719
  %1722 = vst [vmem:[%s8 + $0x8] sm:$0xff] %v1720
  // Predicated region
  $region34: #{residual_block_forward.1} parent=0 // pred_check
    _
  $region35: #{residual_block_forward.1} parent=0 // pred_check_branch
    %1724 = sbr.rel (0) target = $region37
  $region36: #{residual_block_forward.1} parent=0 // pred_region
    _
  $region37: #{residual_block_forward.1} parent=0 // pred_fallthru
    _
  // Predicated region
  $region38: #{residual_block_forward.1} parent=0 // pred_check
    _
  $region39: #{residual_block_forward.1} parent=0 // pred_check_branch
    %1726 = sbr.rel (0) target = $region41
  $region40: #{residual_block_forward.1} parent=0 // pred_region
    _
  $region41: #{residual_block_forward.1} parent=0 // pred_fallthru
    _

</llo_original>
